<compile_context>
chip_gen: v5e
topology: v5e:2x2
jax: 0.10.0
libtpu: 0.0.40
codegen_flags: <defaults>
</compile_context>

<pallas_src>
import functools
import math

import jax
import jax.numpy as jnp
from jax import lax
from jax.experimental import pallas as pl
from jax.experimental.pallas import tpu as pltpu


def _aspp_kernel(x_ref, wt_ref, b_ref, out_ref, *, rates, pad, TH, W):
    # x_ref:   (1, TH + 2*pad, W + 2*pad, Cin)   bf16 halo window (one row tile)
    # wt_ref:  (Cout, T*Cin)                     bf16, columns ordered (r, ky, kx, ci)
    # b_ref:   (Cout, 1)                         f32 summed bias
    # out_ref: (1, Cout, TH*W)                   lane-dense NCHW-flat output tile
    x = x_ref[0]                                               # (THH, Wp, Cin)

    # Build the im2col slab once per tile (tap fusion).  The kx shifts touch the
    # sublane (W) axis -> done once per (rate, kx) on the full-height window;
    # the ky shifts are cheap major-axis slices.
    groups = []
    for r in rates:                                            # static unroll (len(rates) small)
        cols = jnp.concatenate(
            [x[:, pad + (kx - 1) * r: pad + (kx - 1) * r + W, :] for kx in range(3)],
            axis=-1)                                           # (THH, W, 3*Cin)
        rows = jnp.concatenate(
            [cols[pad + (ky - 1) * r: pad + (ky - 1) * r + TH] for ky in range(3)],
            axis=-1)                                           # (TH, W, 9*Cin)
        groups.append(rows)
    slab = jnp.concatenate(groups, axis=-1)                    # (TH, W, T*Cin)
    K = slab.shape[-1]
    slab2d = slab.reshape(TH * W, K)                           # minor dim unchanged -> cheap

    # One fused MXU contraction, f32 accumulation.  Computing W @ slab^T gives a
    # (Cout, TH*W) result directly: TH*W (a multiple of 128) lands on the lane
    # axis, so the store below is a dense, unmasked vst.
    acc = jnp.dot(wt_ref[...], slab2d.T,
                  preferred_element_type=jnp.float32)          # (Cout, TH*W)
    acc = acc + b_ref[...]                                     # (Cout, 1) lane-broadcast
    out_ref[0] = acc.astype(out_ref.dtype)


def aspp_forward(x_nchw, weights, biases, rates, row_tile=None):
    """x_nchw: (N, Cin, H, W). weights: list of (Cout, Cin, 3, 3). biases: list of (Cout,)."""
    N, Cin, H, W = x_nchw.shape
    Cout = weights[0].shape[0]
    R = len(rates)
    pad = max(rates)

    # ---- row-tile selection: keep TH*W a multiple of 128 (lane-dense output) and
    # ---- keep the bf16 halo block small so double-buffering fits comfortably in
    # ---- scoped VMEM on every generation (v7x only has 64 MiB physical).
    if row_tile is None:
        t = 128 // math.gcd(W, 128)            # smallest TH making TH*W % 128 == 0
        if t >= H:
            TH = H
        else:
            TH = t
            while TH * 2 < H and (TH * 2 + 2 * pad) * (W + 2 * pad) * Cin * 2 <= (1 << 20):
                TH *= 2
    else:
        TH = row_tile
    nH = -(-H // TH)                           # cdiv
    assert (TH * W) % 128 == 0 or nH == 1, "row tile must keep the output lane-dense"

    THH = TH + 2 * pad
    Wp = W + 2 * pad
    Hrows = nH * TH                            # H rounded up to a whole number of tiles

    # ---- input prep: NHWC + zero pad + overlapping halo row-windows, cast to bf16.
    x_nhwc = jnp.transpose(x_nchw, (0, 2, 3, 1)).astype(jnp.bfloat16)
    x_pad = jnp.pad(x_nhwc, ((0, 0), (pad, pad + (Hrows - H)), (pad, pad), (0, 0)))
    # Overlapping windows let plain BlockSpecs double-buffer the halo tiles.
    x_halo = jnp.stack([x_pad[:, h * TH: h * TH + THH] for h in range(nH)], axis=1)
    x_halo = x_halo.reshape(N * nH, THH, Wp, Cin)              # block index = n*nH + h

    # ---- fused weights: (Cout, Cin, 3, 3) per rate -> (Cout, R*9*Cin), cols (r, ky, kx, ci).
    w_t = jnp.concatenate(
        [jnp.transpose(w, (0, 2, 3, 1)).reshape(Cout, 9 * Cin) for w in weights],
        axis=1).astype(jnp.bfloat16)
    Ktot = R * 9 * Cin

    # ---- summed bias (valid because the convolutions are summed), lane-broadcast shape.
    b_sum = sum(biases).astype(jnp.float32).reshape(Cout, 1)

    kernel = functools.partial(_aspp_kernel, rates=tuple(rates), pad=pad, TH=TH, W=W)

    out_flat = pl.pallas_call(
        kernel,
        out_shape=jax.ShapeDtypeStruct((N, Cout, Hrows * W), x_nchw.dtype),
        grid_spec=pltpu.PrefetchScalarGridSpec(
            num_scalar_prefetch=0,
            grid=(N, nH),
            in_specs=[
                pl.BlockSpec((1, THH, Wp, Cin),
                             lambda n, h, nH=nH: (n * nH + h, 0, 0, 0)),
                pl.BlockSpec((Cout, Ktot), lambda n, h: (0, 0)),
                pl.BlockSpec((Cout, 1), lambda n, h: (0, 0)),
            ],
            out_specs=pl.BlockSpec((1, Cout, TH * W), lambda n, h: (n, 0, h)),
        ),
        compiler_params=pltpu.CompilerParams(
            # Both grid axes are independent -> eligible for megacore sharding (v7x).
            dimension_semantics=("parallel", "parallel"),
            # 32 MiB is safe on every generation (v5e default is only 16 MiB).
            # For large tiles raise toward ~96 MiB on v5e/v6e (128 MiB physical)
            # but keep <= ~48 MiB on v7x (64 MiB physical).
            vmem_limit_bytes=32 * 1024 * 1024,
        ),
    )(x_halo, w_t, b_sum)

    # Output is already channel-major (NCHW flattened): just reshape + trim pad rows.
    return out_flat.reshape(N, Cout, Hrows, W)[:, :, :H, :]


def aspp_reference(x_nchw, weights, biases, rates):
    """Pure-JAX f32 reference using lax.conv_general_dilated (matches PyTorch Conv2d)."""
    out = None
    for r, w, b in zip(rates, weights, biases):
        y = lax.conv_general_dilated(
            x_nchw, w,
            window_strides=(1, 1),
            padding=[(r, r), (r, r)],
            rhs_dilation=(r, r),
            dimension_numbers=("NCHW", "OIHW", "NCHW"),
        ) + b[None, :, None, None]
        out = y if out is None else out + y
    return out


if __name__ == "__main__":
    # Small shapes consistent with the module's forward.
    N, Cin, Cout, H, W = 2, 4, 4, 16, 16
    rates = (1, 2, 4)

    key = jax.random.PRNGKey(0)
    kx, *kws = jax.random.split(key, 1 + len(rates))
    x = jax.random.normal(kx, (N, Cin, H, W), dtype=jnp.float32)

    # Parameter init mirroring the PyTorch module: weight ~ N(0, 0.01), bias = 0.
    weights = [
        0.01 * jax.random.normal(k, (Cout, Cin, 3, 3), dtype=jnp.float32)
        for k in kws
    ]
    biases = [jnp.zeros((Cout,), dtype=jnp.float32) for _ in rates]

    fwd = jax.jit(functools.partial(aspp_forward, rates=rates))
    out = jax.block_until_ready(fwd(x, weights, biases))

    ref = jax.block_until_ready(aspp_reference(x, weights, biases, rates))
    assert out.shape == (N, Cout, H, W)
    # bf16 inputs / f32 accumulation -> relaxed tolerance vs the f32 reference.
    assert jnp.allclose(out, ref, atol=2e-2, rtol=2e-2), "mismatch vs reference"

    print("KERNEL_OK")
</pallas_src>

<mosaic_0001>
module attributes {stable_mosaic.version = 11 : i64} {
  func.func @_aspp_kernel(%arg0: i32, %arg1: i32, %arg2: memref<1x16x24x4xbf16, #tpu.memory_space<vmem>>, %arg3: memref<4x108xbf16, #tpu.memory_space<vmem>>, %arg4: memref<4x1xf32, #tpu.memory_space<vmem>>, %arg5: memref<1x4x128xf32, #tpu.memory_space<vmem>>) attributes {dimension_semantics = [#tpu.dimension_semantics<parallel>, #tpu.dimension_semantics<parallel>], iteration_bounds = array<i64: 2, 2>, scalar_prefetch = 0 : i64, scratch_operands = 0 : i64, tpu.core_type = #tpu.core_type<tc>, window_params = [{transform_indices = @transform_0, window_bounds = array<i64: 1, 16, 24, 4>}, {pipeline_mode = #tpu.pipeline_mode<synchronous>, transform_indices = @transform_1, window_bounds = array<i64: 4, 108>}, {pipeline_mode = #tpu.pipeline_mode<synchronous>, transform_indices = @transform_2, window_bounds = array<i64: 4, 1>}, {transform_indices = @transform_3, window_bounds = array<i64: 1, 4, 128>}]} {
    %c0 = arith.constant 0 : index
    %c0_0 = arith.constant 0 : index
    %c0_1 = arith.constant 0 : index
    %c0_2 = arith.constant 0 : index
    %0 = vector.load %arg2[%c0, %c0_0, %c0_1, %c0_2] : memref<1x16x24x4xbf16, #tpu.memory_space<vmem>>, vector<1x16x24x4xbf16>
    %1 = vector.shape_cast %0 : vector<1x16x24x4xbf16> to vector<16x24x4xbf16>
    %2 = vector.extract_strided_slice %1 {offsets = [0, 3, 0], sizes = [16, 16, 4], strides = [1, 1, 1]} : vector<16x24x4xbf16> to vector<16x16x4xbf16>
    %3 = vector.extract_strided_slice %1 {offsets = [0, 4, 0], sizes = [16, 16, 4], strides = [1, 1, 1]} : vector<16x24x4xbf16> to vector<16x16x4xbf16>
    %4 = vector.extract_strided_slice %1 {offsets = [0, 5, 0], sizes = [16, 16, 4], strides = [1, 1, 1]} : vector<16x24x4xbf16> to vector<16x16x4xbf16>
    %5 = tpu.concatenate %2, %3, %4 in 2 : vector<16x16x4xbf16>, vector<16x16x4xbf16>, vector<16x16x4xbf16> -> vector<16x16x12xbf16>
    %6 = vector.extract_strided_slice %5 {offsets = [3, 0, 0], sizes = [8, 16, 12], strides = [1, 1, 1]} : vector<16x16x12xbf16> to vector<8x16x12xbf16>
    %7 = vector.extract_strided_slice %5 {offsets = [4, 0, 0], sizes = [8, 16, 12], strides = [1, 1, 1]} : vector<16x16x12xbf16> to vector<8x16x12xbf16>
    %8 = vector.extract_strided_slice %5 {offsets = [5, 0, 0], sizes = [8, 16, 12], strides = [1, 1, 1]} : vector<16x16x12xbf16> to vector<8x16x12xbf16>
    %9 = tpu.concatenate %6, %7, %8 in 2 : vector<8x16x12xbf16>, vector<8x16x12xbf16>, vector<8x16x12xbf16> -> vector<8x16x36xbf16>
    %10 = vector.extract_strided_slice %1 {offsets = [0, 2, 0], sizes = [16, 16, 4], strides = [1, 1, 1]} : vector<16x24x4xbf16> to vector<16x16x4xbf16>
    %11 = vector.extract_strided_slice %1 {offsets = [0, 4, 0], sizes = [16, 16, 4], strides = [1, 1, 1]} : vector<16x24x4xbf16> to vector<16x16x4xbf16>
    %12 = vector.extract_strided_slice %1 {offsets = [0, 6, 0], sizes = [16, 16, 4], strides = [1, 1, 1]} : vector<16x24x4xbf16> to vector<16x16x4xbf16>
    %13 = tpu.concatenate %10, %11, %12 in 2 : vector<16x16x4xbf16>, vector<16x16x4xbf16>, vector<16x16x4xbf16> -> vector<16x16x12xbf16>
    %14 = vector.extract_strided_slice %13 {offsets = [2, 0, 0], sizes = [8, 16, 12], strides = [1, 1, 1]} : vector<16x16x12xbf16> to vector<8x16x12xbf16>
    %15 = vector.extract_strided_slice %13 {offsets = [4, 0, 0], sizes = [8, 16, 12], strides = [1, 1, 1]} : vector<16x16x12xbf16> to vector<8x16x12xbf16>
    %16 = vector.extract_strided_slice %13 {offsets = [6, 0, 0], sizes = [8, 16, 12], strides = [1, 1, 1]} : vector<16x16x12xbf16> to vector<8x16x12xbf16>
    %17 = tpu.concatenate %14, %15, %16 in 2 : vector<8x16x12xbf16>, vector<8x16x12xbf16>, vector<8x16x12xbf16> -> vector<8x16x36xbf16>
    %18 = vector.extract_strided_slice %1 {offsets = [0, 0, 0], sizes = [16, 16, 4], strides = [1, 1, 1]} : vector<16x24x4xbf16> to vector<16x16x4xbf16>
    %19 = vector.extract_strided_slice %1 {offsets = [0, 4, 0], sizes = [16, 16, 4], strides = [1, 1, 1]} : vector<16x24x4xbf16> to vector<16x16x4xbf16>
    %20 = vector.extract_strided_slice %1 {offsets = [0, 8, 0], sizes = [16, 16, 4], strides = [1, 1, 1]} : vector<16x24x4xbf16> to vector<16x16x4xbf16>
    %21 = tpu.concatenate %18, %19, %20 in 2 : vector<16x16x4xbf16>, vector<16x16x4xbf16>, vector<16x16x4xbf16> -> vector<16x16x12xbf16>
    %22 = vector.extract_strided_slice %21 {offsets = [0, 0, 0], sizes = [8, 16, 12], strides = [1, 1, 1]} : vector<16x16x12xbf16> to vector<8x16x12xbf16>
    %23 = vector.extract_strided_slice %21 {offsets = [4, 0, 0], sizes = [8, 16, 12], strides = [1, 1, 1]} : vector<16x16x12xbf16> to vector<8x16x12xbf16>
    %24 = vector.extract_strided_slice %21 {offsets = [8, 0, 0], sizes = [8, 16, 12], strides = [1, 1, 1]} : vector<16x16x12xbf16> to vector<8x16x12xbf16>
    %25 = tpu.concatenate %22, %23, %24 in 2 : vector<8x16x12xbf16>, vector<8x16x12xbf16>, vector<8x16x12xbf16> -> vector<8x16x36xbf16>
    %26 = tpu.concatenate %9, %17, %25 in 2 : vector<8x16x36xbf16>, vector<8x16x36xbf16>, vector<8x16x36xbf16> -> vector<8x16x108xbf16>
    %27 = vector.shape_cast %26 : vector<8x16x108xbf16> to vector<128x108xbf16>
    %c0_3 = arith.constant 0 : index
    %c0_4 = arith.constant 0 : index
    %28 = vector.load %arg3[%c0_3, %c0_4] : memref<4x108xbf16, #tpu.memory_space<vmem>>, vector<4x108xbf16>
    %29 = tpu.transpose %27, [1, 0] : vector<128x108xbf16> -> vector<108x128xbf16>
    %cst = arith.constant dense<0.000000e+00> : vector<4x128xf32>
    %30 = tpu.matmul %28, %29, %cst {dimension_numbers = #tpu.dot_dimension_numbers<[1], [0], [0], [1], [0, 0, 1, 1], [], []>} : vector<4x108xbf16>, vector<108x128xbf16>, vector<4x128xf32> -> vector<4x128xf32>
    %c0_5 = arith.constant 0 : index
    %c0_6 = arith.constant 0 : index
    %31 = vector.load %arg4[%c0_5, %c0_6] : memref<4x1xf32, #tpu.memory_space<vmem>>, vector<4x1xf32>
    %32 = vector.broadcast %31 : vector<4x1xf32> to vector<4x128xf32>
    %33 = arith.addf %30, %32 : vector<4x128xf32>
    %c0_7 = arith.constant 0 : index
    %c0_8 = arith.constant 0 : index
    %c0_9 = arith.constant 0 : index
    %34 = vector.load %arg5[%c0_7, %c0_8, %c0_9] : memref<1x4x128xf32, #tpu.memory_space<vmem>>, vector<1x4x128xf32>
    %35 = vector.shape_cast %34 : vector<1x4x128xf32> to vector<4x128xf32>
    %36 = vector.shape_cast %33 : vector<4x128xf32> to vector<1x4x128xf32>
    tpu.vector_store %arg5[%c0_7, %c0_8, %c0_9], %36 {strides = array<i32>} : memref<1x4x128xf32, #tpu.memory_space<vmem>>, vector<1x4x128xf32>,
    return
  }
  func.func @transform_0(%arg0: i32, %arg1: i32) -> (i32, i32, i32, i32) {
    %c2_i32 = arith.constant 2 : i32
    %0 = arith.muli %arg0, %c2_i32 : i32
    %1 = arith.addi %0, %arg1 : i32
    %c0_i32 = arith.constant 0 : i32
    %c0_i32_0 = arith.constant 0 : i32
    %c0_i32_1 = arith.constant 0 : i32
    %c0_i32_2 = arith.constant 0 : i32
    return %1, %c0_i32, %c0_i32_0, %c0_i32_1 : i32, i32, i32, i32
  }
  func.func @transform_1(%arg0: i32, %arg1: i32) -> (i32, i32) {
    %c0_i32 = arith.constant 0 : i32
    %c0_i32_0 = arith.constant 0 : i32
    %c0_i32_1 = arith.constant 0 : i32
    return %c0_i32, %c0_i32_0 : i32, i32
  }
  func.func @transform_2(%arg0: i32, %arg1: i32) -> (i32, i32) {
    %c0_i32 = arith.constant 0 : i32
    %c0_i32_0 = arith.constant 0 : i32
    %c0_i32_1 = arith.constant 0 : i32
    return %c0_i32, %c0_i32_0 : i32, i32
  }
  func.func @transform_3(%arg0: i32, %arg1: i32) -> (i32, i32, i32) {
    %c0_i32 = arith.constant 0 : i32
    %c0_i32_0 = arith.constant 0 : i32
    return %arg0, %c0_i32, %arg1 : i32, i32, i32
  }
}

</mosaic_0001>

<llo_original>
// kernel: aspp_forward.1
$region0: #{aspp_forward.1}
  #allocation0 [shape = 'u32[]', space=smem, size = 0x4, offset = 0x4, fixed_abs, tag = 'smem constant byte address 0x4 - core index']
  #allocation1 [shape = 'u32[72,128]{1,0:T(1,128)}', space=vmem, size = 0x9000, scoped, tag = 'internal scratch']
  %s0 = inlined_call_operand.vmem [shape: bf16[4,16,24,4], index: 0, kind: input, shape index: {}]
  %s1 = inlined_call_operand.vmem [shape: bf16[4,108], index: 1, kind: input, shape index: {}]
  %s2 = inlined_call_operand.vmem [shape: f32[4,1], index: 2, kind: input, shape index: {}]
  %s3 = inlined_call_operand.vmem [shape: f32[2,4,256], index: 3, kind: output, shape index: {}]
  %s4 = sld [smem:[#allocation0]]
  $region45: #{aspp_forward.1} parent=0
    _
  %s6 = ssub.s32 1, %s4
  %s7 = scalar_select 0, %s6, %s4
  loop: start=0, step=1, limit=6
  $region2: #{aspp_forward.1} parent=0 // loop_pre_header
    _
  $region3: #{aspp_forward.1} parent=0 // loop_header
    %s9 = sphi 0, %s13
    %p10 = scmp.ge.s32.totalorder %s9, 6
    %s16 = sphi 0, %s28
    %s17 = sphi 0, %s24
    %s18 = sphi 0, %s16
    %s19 = sphi 0, %s17
    %s20 = sphi 0, %s18
    %s21 = sphi 0, %s19
    %s35 = sphi 0, %s37
    %s38 = sphi 0, %s35
    %s39 = sphi 0, %s38
    %s55 = sphi 0, %s39
    %s59 = sphi 0, %s59
    %s61 = sphi 0, %s59
    %s62 = sphi 0, %s61
    %s76 = sphi 0, %s62
    %s80 = sphi 0, %s80
    %s82 = sphi 0, %s80
    %s83 = sphi 0, %s82
    %s97 = sphi 0, %s83
    %s105 = sphi 0, %s107
    %s108 = sphi 0, %s105
    %s109 = sphi 0, %s108
    %s125 = sphi 0, %s109
  $region4: #{aspp_forward.1} parent=0 // loop_header_branch
    %12 = sbr.rel (%p10) target = $region8
  $region5: #{aspp_forward.1} parent=0 // loop_body
    %s14 = ssub.s32 %s9, 1
    %s15 = ssub.s32 %s9, 2
    %s22 = sadd.s32 1, %s17
    %p23 = scmp.ge.s32.totalorder %s22, 2
    %s24 = scalar_select %p23, 0, %s22
    %s25 = sadd.s32 1, %s16
    %s26 = scalar_select %p23, %s25, %s16
    %p27 = scmp.ge.s32.totalorder %s26, 2
    %s28 = scalar_select %p27, 0, %s26
    %s29 = smul.u32 %s16, 2
    %s30 = sadd.s32 %s29, %s17
    %s31 = smul.u32 %s28, 2
    %s32 = sadd.s32 %s31, %s24
    %s33 = ssub.s32 %s30, %s32
    %p34 = scmp.eq.s32.totalorder %s33, 0
    %s36 = sadd.s32 %s35, 1
    %s37 = scalar_select %p34, %s35, %s36
    %p40 = pneg %p34
    %p41 = scmp.eq.s32.totalorder %s9, 3
    %p42 = por %p40, %p41
    %p43 = scmp.ne.s32.totalorder %s35, %s38
    %p44 = scmp.eq.s32.totalorder %s9, 0
    %p45 = por %p43, %p44
    %p46 = scmp.ne.s32.totalorder %s35, %s38
    %p47 = scmp.eq.s32.totalorder %s14, 3
    %p48 = por %p46, %p47
    %p49 = scmp.ne.s32.totalorder %s38, %s39
    %p50 = scmp.eq.s32.totalorder %s14, 0
    %p51 = por %p49, %p50
    %p52 = scmp.ne.s32.totalorder %s38, %s39
    %p53 = scmp.eq.s32.totalorder %s15, 3
    %p54 = por %p52, %p53
    %p56 = scmp.ne.s32.totalorder %s39, %s55
    %p57 = scmp.eq.s32.totalorder %s15, 0
    %p58 = por %p56, %p57
    %s60 = sadd.s32 %s59, 1
    %p63 = scmp.eq.s32.totalorder %s9, 3
    %p64 = scmp.ne.s32.totalorder %s59, %s61
    %p65 = scmp.eq.s32.totalorder %s9, 0
    %p66 = por %p64, %p65
    %p67 = scmp.ne.s32.totalorder %s59, %s61
    %p68 = scmp.eq.s32.totalorder %s14, 3
    %p69 = por %p67, %p68
    %p70 = scmp.ne.s32.totalorder %s61, %s62
    %p71 = scmp.eq.s32.totalorder %s14, 0
    %p72 = por %p70, %p71
    %p73 = scmp.ne.s32.totalorder %s61, %s62
    %p74 = scmp.eq.s32.totalorder %s15, 3
    %p75 = por %p73, %p74
    %p77 = scmp.ne.s32.totalorder %s62, %s76
    %p78 = scmp.eq.s32.totalorder %s15, 0
    %p79 = por %p77, %p78
    %s81 = sadd.s32 %s80, 1
    %p84 = scmp.eq.s32.totalorder %s9, 3
    %p85 = scmp.ne.s32.totalorder %s80, %s82
    %p86 = scmp.eq.s32.totalorder %s9, 0
    %p87 = por %p85, %p86
    %p88 = scmp.ne.s32.totalorder %s80, %s82
    %p89 = scmp.eq.s32.totalorder %s14, 3
    %p90 = por %p88, %p89
    %p91 = scmp.ne.s32.totalorder %s82, %s83
    %p92 = scmp.eq.s32.totalorder %s14, 0
    %p93 = por %p91, %p92
    %p94 = scmp.ne.s32.totalorder %s82, %s83
    %p95 = scmp.eq.s32.totalorder %s15, 3
    %p96 = por %p94, %p95
    %p98 = scmp.ne.s32.totalorder %s83, %s97
    %p99 = scmp.eq.s32.totalorder %s15, 0
    %p100 = por %p98, %p99
    %s101 = ssub.s32 %s16, %s28
    %s102 = ssub.s32 %s17, %s24
    %s103 = sor.u32 %s101, %s102
    %p104 = scmp.eq.s32.totalorder %s103, 0
    %s106 = sadd.s32 %s105, 1
    %s107 = scalar_select %p104, %s105, %s106
    %p110 = pneg %p104
    %p111 = scmp.eq.s32.totalorder %s9, 3
    %p112 = por %p110, %p111
    %p113 = scmp.ne.s32.totalorder %s105, %s108
    %p114 = scmp.eq.s32.totalorder %s9, 0
    %p115 = por %p113, %p114
    %p116 = scmp.ne.s32.totalorder %s105, %s108
    %p117 = scmp.eq.s32.totalorder %s14, 3
    %p118 = por %p116, %p117
    %p119 = scmp.ne.s32.totalorder %s108, %s109
    %p120 = scmp.eq.s32.totalorder %s14, 0
    %p121 = por %p119, %p120
    %p122 = scmp.ne.s32.totalorder %s108, %s109
    %p123 = scmp.eq.s32.totalorder %s15, 3
    %p124 = por %p122, %p123
    %p126 = scmp.ne.s32.totalorder %s109, %s125
    %p127 = scmp.eq.s32.totalorder %s15, 0
    %p128 = por %p126, %p127
    %p129 = scmp.le.s32.totalorder 1, %s9
    %p130 = scmp.lt.s32.totalorder %s9, 5
    %p131 = pnand %p129, %p130
    %p132 = pneg %p131
    // Predicated region
    $region9: #{aspp_forward.1} parent=5 // pred_check
      _
    $region10: #{aspp_forward.1} parent=5 // pred_check_branch
      %134 = sbr.rel (%p131) target = $region12
    $region11: #{aspp_forward.1} parent=5 // pred_region
      %s135 = ssub.s32 %s9, 1
      // Predicated region
      $region13: #{aspp_forward.1} parent=11 // pred_check
        %p136 = pneg %p72
      $region14: #{aspp_forward.1} parent=11 // pred_check_branch
        %138 = sbr.rel (%p136) target = $region16
      $region15: #{aspp_forward.1} parent=11 // pred_region
        _
      $region16: #{aspp_forward.1} parent=11 // pred_fallthru
        _
      // Predicated region
      $region17: #{aspp_forward.1} parent=11 // pred_check
        %p139 = pneg %p93
      $region18: #{aspp_forward.1} parent=11 // pred_check_branch
        %141 = sbr.rel (%p139) target = $region20
      $region19: #{aspp_forward.1} parent=11 // pred_region
        _
      $region20: #{aspp_forward.1} parent=11 // pred_fallthru
        _
    $region12: #{aspp_forward.1} parent=5 // pred_fallthru
      _
    %p142 = scmp.lt.s32.totalorder %s9, 4
    // Predicated region
    $region21: #{aspp_forward.1} parent=5 // pred_check
      %p143 = pneg %p142
    $region22: #{aspp_forward.1} parent=5 // pred_check_branch
      %145 = sbr.rel (%p143) target = $region24
    $region23: #{aspp_forward.1} parent=5 // pred_region
      // Predicated region
      $region25: #{aspp_forward.1} parent=23 // pred_check
        %p146 = pneg %p45
      $region26: #{aspp_forward.1} parent=23 // pred_check_branch
        %148 = sbr.rel (%p146) target = $region28
      $region27: #{aspp_forward.1} parent=23 // pred_region
        %s149 = smul.u32 %s16, 2
        %s150 = sadd.s32 %s149, %s17
        %p151 = scmp.lt.s32.totalorder %s150, 3
        %s152 = scalar_select %p151, %s150, 3
        %s153 = smul.addr %s152, 48
        %s154 = smul.addr %s153, 4
        %s155 = scalar_lea.vmem %s0, %s154
        %s156 = smul.u32 %s16, 2
        %s157 = sadd.s32 %s156, %s17
      $region28: #{aspp_forward.1} parent=23 // pred_fallthru
        _
    $region24: #{aspp_forward.1} parent=5 // pred_fallthru
      _
    %p158 = scmp.le.s32.totalorder 1, %s9
    %p159 = scmp.lt.s32.totalorder %s9, 5
    %p160 = pnand %p158, %p159
    %p161 = pneg %p160
    // Predicated region
    $region29: #{aspp_forward.1} parent=5 // pred_check
      _
    $region30: #{aspp_forward.1} parent=5 // pred_check_branch
      %163 = sbr.rel (%p160) target = $region32
    $region31: #{aspp_forward.1} parent=5 // pred_region
      %s164 = ssub.s32 %s9, 1
      %s165 = smul.u32 %s18, 2
      %s166 = sadd.s32 %s165, %s19
      %p167 = scmp.lt.s32.totalorder %s166, 3
      %s168 = scalar_select %p167, %s166, 3
      %s169 = smul.addr %s168, 48
      %s170 = smul.addr %s169, 4
      %s171 = scalar_lea.vmem %s0, %s170
      %p172 = pneg %p51
      %p173 = pneg %p48
      %p174 = pneg %p72
      %p175 = pneg %p69
      %p176 = pneg %p93
      %p177 = pneg %p90
      %p178 = pneg %p121
      %p179 = pneg %p118
      %p180 = scmp.lt.s32.totalorder %s18, 1
      %s181 = scalar_select %p180, %s18, 1
      %p182 = scmp.lt.s32.totalorder %s19, 1
      %s183 = scalar_select %p182, %s19, 1
      %s184 = smul.addr %s181, 2
      %s185 = sadd.s32 %s183, %s184
      %s186 = smul.addr %s185, 4
      %s187 = scalar_lea.vmem %s3, %s186
      %s188 = smul.u32 %s18, 2
      %s189 = sadd.s32 %s188, %s19
      %p190 = scmp.lt.s32.totalorder %s189, 3
      %s191 = scalar_select %p190, %s189, 3
      %s192 = smul.addr %s191, 48
      %s193 = smul.addr %s192, 4
      %s194 = scalar_lea.vmem %s0, %s193
      %s195 = smul.u32 %s18, 2
      %s196 = sadd.s32 %s195, %s19
      %p197 = scmp.lt.s32.totalorder %s18, 1
      %s198 = scalar_select %p197, %s18, 1
      %p199 = scmp.lt.s32.totalorder %s19, 1
      %s200 = scalar_select %p199, %s19, 1
      %s201 = smul.addr %s198, 2
      %s202 = sadd.s32 %s200, %s201
      %s203 = smul.addr %s202, 4
      %s204 = scalar_lea.vmem %s3, %s203
      %v205 = vld [vmem:[%s194] sm:$0xf]
      %v206 = vld [vmem:[%s194 + $0x4] sm:$0xf]
      %v207 = vld [vmem:[%s194 + $0x8] sm:$0xf]
      %v208 = vld [vmem:[%s194 + $0xc] sm:$0xf]
      %v209 = vld [vmem:[%s194 + $0x10] sm:$0xf]
      %v210 = vld [vmem:[%s194 + $0x14] sm:$0xf]
      %v211 = vld [vmem:[%s194 + $0x18] sm:$0xf]
      %v212 = vld [vmem:[%s194 + $0x1c] sm:$0xf]
      %v213 = vld [vmem:[%s194 + $0x20] sm:$0xf]
      %v214 = vld [vmem:[%s194 + $0x24] sm:$0xf]
      %v215 = vld [vmem:[%s194 + $0x28] sm:$0xf]
      %v216 = vld [vmem:[%s194 + $0x2c] sm:$0xf]
      %v217 = vld [vmem:[%s194 + $0x30] sm:$0xf]
      %v218 = vld [vmem:[%s194 + $0x34] sm:$0xf]
      %v219 = vld [vmem:[%s194 + $0x38] sm:$0xf]
      %v220 = vld [vmem:[%s194 + $0x3c] sm:$0xf]
      %v221 = vld [vmem:[%s194 + $0x40] sm:$0xf]
      %v222 = vld [vmem:[%s194 + $0x44] sm:$0xf]
      %v223 = vld [vmem:[%s194 + $0x48] sm:$0xf]
      %v224 = vld [vmem:[%s194 + $0x4c] sm:$0xf]
      %v225 = vld [vmem:[%s194 + $0x50] sm:$0xf]
      %v226 = vld [vmem:[%s194 + $0x54] sm:$0xf]
      %v227 = vld [vmem:[%s194 + $0x58] sm:$0xf]
      %v228 = vld [vmem:[%s194 + $0x5c] sm:$0xf]
      %v229 = vld [vmem:[%s194 + $0x60] sm:$0xf]
      %v230 = vld [vmem:[%s194 + $0x64] sm:$0xf]
      %v231 = vld [vmem:[%s194 + $0x68] sm:$0xf]
      %v232 = vld [vmem:[%s194 + $0x6c] sm:$0xf]
      %v233 = vld [vmem:[%s194 + $0x70] sm:$0xf]
      %v234 = vld [vmem:[%s194 + $0x74] sm:$0xf]
      %v235 = vld [vmem:[%s194 + $0x78] sm:$0xf]
      %v236 = vld [vmem:[%s194 + $0x7c] sm:$0xf]
      %v237 = vld [vmem:[%s194 + $0x80] sm:$0xf]
      %v238 = vld [vmem:[%s194 + $0x84] sm:$0xf]
      %v239 = vld [vmem:[%s194 + $0x88] sm:$0xf]
      %v240 = vld [vmem:[%s194 + $0x8c] sm:$0xf]
      %v241 = vld [vmem:[%s194 + $0x90] sm:$0xf]
      %v242 = vld [vmem:[%s194 + $0x94] sm:$0xf]
      %v243 = vld [vmem:[%s194 + $0x98] sm:$0xf]
      %v244 = vld [vmem:[%s194 + $0x9c] sm:$0xf]
      %v245 = vld [vmem:[%s194 + $0xa0] sm:$0xf]
      %v246 = vld [vmem:[%s194 + $0xa4] sm:$0xf]
      %v247 = vld [vmem:[%s194 + $0xa8] sm:$0xf]
      %v248 = vld [vmem:[%s194 + $0xac] sm:$0xf]
      %v249 = vld [vmem:[%s194 + $0xb0] sm:$0xf]
      %v250 = vld [vmem:[%s194 + $0xb4] sm:$0xf]
      %v251 = vld [vmem:[%s194 + $0xb8] sm:$0xf]
      %v252 = vld [vmem:[%s194 + $0xbc] sm:$0xf]
      %v283 = vunpack.c.l.b16 %v214
      %v284 = vunpack.c.l.b16 %v215
      %v285 = vunpack.c.l.b16 %v216
      %v286 = vunpack.c.l.b16 %v217
      %v287 = vunpack.c.l.b16 %v218
      %v288 = vunpack.c.l.b16 %v219
      %v289 = vunpack.c.l.b16 %v220
      %v290 = vunpack.c.l.b16 %v221
      %v291 = vunpack.c.l.b16 %v222
      %v292 = vunpack.c.l.b16 %v223
      %v293 = vunpack.c.l.b16 %v224
      %v294 = vunpack.c.l.b16 %v225
      %v295 = vunpack.c.l.b16 %v226
      %v296 = vunpack.c.l.b16 %v227
      %v297 = vunpack.c.l.b16 %v228
      %v298 = vunpack.c.l.b16 %v229
      %v299 = vunpack.c.l.b16 %v230
      %v300 = vunpack.c.l.b16 %v231
      %v301 = vunpack.c.l.b16 %v232
      %v302 = vunpack.c.l.b16 %v233
      %v303 = vunpack.c.l.b16 %v234
      %v304 = vunpack.c.l.b16 %v235
      %v305 = vunpack.c.l.b16 %v236
      %v306 = vunpack.c.l.b16 %v237
      %v307 = vunpack.c.l.b16 %v238
      %v308 = vunpack.c.l.b16 %v239
      %v309 = vunpack.c.l.b16 %v240
      %v310 = vunpack.c.l.b16 %v241
      %v311 = vunpack.c.l.b16 %v242
      %v312 = vunpack.c.l.b16 %v243
      %v313 = vpack.c.b16 %v284, %v283
      %v314 = vpack.c.b16 %v285, %v285
      %v315 = vpack.c.b16 %v287, %v286
      %v316 = vpack.c.b16 %v288, %v288
      %v317 = vpack.c.b16 %v290, %v289
      %v318 = vpack.c.b16 %v291, %v291
      %v319 = vpack.c.b16 %v293, %v292
      %v320 = vpack.c.b16 %v294, %v294
      %v321 = vpack.c.b16 %v296, %v295
      %v322 = vpack.c.b16 %v297, %v297
      %v323 = vpack.c.b16 %v299, %v298
      %v324 = vpack.c.b16 %v300, %v300
      %v325 = vpack.c.b16 %v302, %v301
      %v326 = vpack.c.b16 %v303, %v303
      %v327 = vpack.c.b16 %v305, %v304
      %v328 = vpack.c.b16 %v306, %v306
      %v329 = vpack.c.b16 %v308, %v307
      %v330 = vpack.c.b16 %v309, %v309
      %v331 = vpack.c.b16 %v311, %v310
      %v332 = vpack.c.b16 %v312, %v312
      %vm333 = vsmask.f32 7424
      %v335 = vshrl.u32 %v313, 16
      %v337 = vshll.u32 %v313, 16
      %v339 = vrot.slane %v337, 1
      %v340 = vor.u32 %v335, %v339
      %v342 = vshll.u32 %v314, 16
      %v344 = vrot.slane %v342, 1
      %v345 = vsel %vm333, %v340, %v344
      %v346 = vshrl.u32 %v314, 16
      %v348 = vor.u32 %v346, %v344
      %v350 = vshrl.u32 %v315, 16
      %v352 = vshll.u32 %v315, 16
      %v354 = vrot.slane %v352, 1
      %v355 = vor.u32 %v350, %v354
      %v357 = vshll.u32 %v316, 16
      %v359 = vrot.slane %v357, 1
      %v360 = vsel %vm333, %v355, %v359
      %v361 = vshrl.u32 %v316, 16
      %v363 = vor.u32 %v361, %v359
      %v365 = vshrl.u32 %v317, 16
      %v367 = vshll.u32 %v317, 16
      %v369 = vrot.slane %v367, 1
      %v370 = vor.u32 %v365, %v369
      %v372 = vshll.u32 %v318, 16
      %v374 = vrot.slane %v372, 1
      %v375 = vsel %vm333, %v370, %v374
      %v376 = vshrl.u32 %v318, 16
      %v378 = vor.u32 %v376, %v374
      %v380 = vshrl.u32 %v319, 16
      %v382 = vshll.u32 %v319, 16
      %v384 = vrot.slane %v382, 1
      %v385 = vor.u32 %v380, %v384
      %v387 = vshll.u32 %v320, 16
      %v389 = vrot.slane %v387, 1
      %v390 = vsel %vm333, %v385, %v389
      %v391 = vshrl.u32 %v320, 16
      %v393 = vor.u32 %v391, %v389
      %v395 = vshrl.u32 %v321, 16
      %v397 = vshll.u32 %v321, 16
      %v399 = vrot.slane %v397, 1
      %v400 = vor.u32 %v395, %v399
      %v402 = vshll.u32 %v322, 16
      %v404 = vrot.slane %v402, 1
      %v405 = vsel %vm333, %v400, %v404
      %v406 = vshrl.u32 %v322, 16
      %v408 = vor.u32 %v406, %v404
      %v410 = vshrl.u32 %v323, 16
      %v412 = vshll.u32 %v323, 16
      %v414 = vrot.slane %v412, 1
      %v415 = vor.u32 %v410, %v414
      %v417 = vshll.u32 %v324, 16
      %v419 = vrot.slane %v417, 1
      %v420 = vsel %vm333, %v415, %v419
      %v421 = vshrl.u32 %v324, 16
      %v423 = vor.u32 %v421, %v419
      %v425 = vshrl.u32 %v325, 16
      %v427 = vshll.u32 %v325, 16
      %v429 = vrot.slane %v427, 1
      %v430 = vor.u32 %v425, %v429
      %v432 = vshll.u32 %v326, 16
      %v434 = vrot.slane %v432, 1
      %v435 = vsel %vm333, %v430, %v434
      %v436 = vshrl.u32 %v326, 16
      %v438 = vor.u32 %v436, %v434
      %v440 = vshrl.u32 %v327, 16
      %v442 = vshll.u32 %v327, 16
      %v444 = vrot.slane %v442, 1
      %v445 = vor.u32 %v440, %v444
      %v447 = vshll.u32 %v328, 16
      %v449 = vrot.slane %v447, 1
      %v450 = vsel %vm333, %v445, %v449
      %v451 = vshrl.u32 %v328, 16
      %v453 = vor.u32 %v451, %v449
      %v455 = vshrl.u32 %v329, 16
      %v457 = vshll.u32 %v329, 16
      %v459 = vrot.slane %v457, 1
      %v460 = vor.u32 %v455, %v459
      %v462 = vshll.u32 %v330, 16
      %v464 = vrot.slane %v462, 1
      %v465 = vsel %vm333, %v460, %v464
      %v466 = vshrl.u32 %v330, 16
      %v468 = vor.u32 %v466, %v464
      %v470 = vshrl.u32 %v331, 16
      %v472 = vshll.u32 %v331, 16
      %v474 = vrot.slane %v472, 1
      %v475 = vor.u32 %v470, %v474
      %v477 = vshll.u32 %v332, 16
      %v479 = vrot.slane %v477, 1
      %v480 = vsel %vm333, %v475, %v479
      %v481 = vshrl.u32 %v332, 16
      %v483 = vor.u32 %v481, %v479
      %484 = vrot.lane.b32.xlu0 %v345, 4
      %v485 = vpop.permute.xlu0 %484
      %486 = vrot.lane.b32.xlu0 %v348, 4
      %v487 = vpop.permute.xlu0 %486
      %488 = vrot.lane.b32.xlu0 %v360, 4
      %v489 = vpop.permute.xlu0 %488
      %490 = vrot.lane.b32.xlu0 %v363, 4
      %v491 = vpop.permute.xlu0 %490
      %492 = vrot.lane.b32.xlu0 %v375, 4
      %v493 = vpop.permute.xlu0 %492
      %494 = vrot.lane.b32.xlu0 %v378, 4
      %v495 = vpop.permute.xlu0 %494
      %496 = vrot.lane.b32.xlu0 %v390, 4
      %v497 = vpop.permute.xlu0 %496
      %498 = vrot.lane.b32.xlu0 %v393, 4
      %v499 = vpop.permute.xlu0 %498
      %500 = vrot.lane.b32.xlu0 %v405, 4
      %v501 = vpop.permute.xlu0 %500
      %502 = vrot.lane.b32.xlu0 %v408, 4
      %v503 = vpop.permute.xlu0 %502
      %504 = vrot.lane.b32.xlu0 %v420, 4
      %v505 = vpop.permute.xlu0 %504
      %506 = vrot.lane.b32.xlu0 %v423, 4
      %v507 = vpop.permute.xlu0 %506
      %508 = vrot.lane.b32.xlu0 %v435, 4
      %v509 = vpop.permute.xlu0 %508
      %510 = vrot.lane.b32.xlu0 %v438, 4
      %v511 = vpop.permute.xlu0 %510
      %512 = vrot.lane.b32.xlu0 %v450, 4
      %v513 = vpop.permute.xlu0 %512
      %514 = vrot.lane.b32.xlu0 %v453, 4
      %v515 = vpop.permute.xlu0 %514
      %516 = vrot.lane.b32.xlu0 %v465, 4
      %v517 = vpop.permute.xlu0 %516
      %518 = vrot.lane.b32.xlu0 %v468, 4
      %v519 = vpop.permute.xlu0 %518
      %520 = vrot.lane.b32.xlu0 %v480, 4
      %v521 = vpop.permute.xlu0 %520
      %522 = vrot.lane.b32.xlu0 %v483, 4
      %v523 = vpop.permute.xlu0 %522
      %vm524 = vcmask 1046528
      %v525 = vrot.slane %v313, 1
      %v526 = vrot.slane %v314, 1
      %v527 = vsel %vm524, %v525, %v526
      %v528 = vrot.slane %v315, 1
      %v529 = vrot.slane %v316, 1
      %v530 = vsel %vm524, %v528, %v529
      %v531 = vrot.slane %v317, 1
      %v532 = vrot.slane %v318, 1
      %v533 = vsel %vm524, %v531, %v532
      %v534 = vrot.slane %v319, 1
      %v535 = vrot.slane %v320, 1
      %v536 = vsel %vm524, %v534, %v535
      %v537 = vrot.slane %v321, 1
      %v538 = vrot.slane %v322, 1
      %v539 = vsel %vm524, %v537, %v538
      %v540 = vrot.slane %v323, 1
      %v541 = vrot.slane %v324, 1
      %v542 = vsel %vm524, %v540, %v541
      %v543 = vrot.slane %v325, 1
      %v544 = vrot.slane %v326, 1
      %v545 = vsel %vm524, %v543, %v544
      %v546 = vrot.slane %v327, 1
      %v547 = vrot.slane %v328, 1
      %v548 = vsel %vm524, %v546, %v547
      %v549 = vrot.slane %v329, 1
      %v550 = vrot.slane %v330, 1
      %v551 = vsel %vm524, %v549, %v550
      %v552 = vrot.slane %v331, 1
      %v553 = vrot.slane %v332, 1
      %v554 = vsel %vm524, %v552, %v553
      %555 = vrot.lane.b32.xlu0 %v527, 8
      %v556 = vpop.permute.xlu0 %555
      %557 = vrot.lane.b32.xlu0 %v526, 8
      %v558 = vpop.permute.xlu0 %557
      %559 = vrot.lane.b32.xlu0 %v530, 8
      %v560 = vpop.permute.xlu0 %559
      %561 = vrot.lane.b32.xlu0 %v529, 8
      %v562 = vpop.permute.xlu0 %561
      %563 = vrot.lane.b32.xlu0 %v533, 8
      %v564 = vpop.permute.xlu0 %563
      %565 = vrot.lane.b32.xlu0 %v532, 8
      %v566 = vpop.permute.xlu0 %565
      %567 = vrot.lane.b32.xlu0 %v536, 8
      %v568 = vpop.permute.xlu0 %567
      %569 = vrot.lane.b32.xlu0 %v535, 8
      %v570 = vpop.permute.xlu0 %569
      %571 = vrot.lane.b32.xlu0 %v539, 8
      %v572 = vpop.permute.xlu0 %571
      %573 = vrot.lane.b32.xlu0 %v538, 8
      %v574 = vpop.permute.xlu0 %573
      %575 = vrot.lane.b32.xlu0 %v542, 8
      %v576 = vpop.permute.xlu0 %575
      %577 = vrot.lane.b32.xlu0 %v541, 8
      %v578 = vpop.permute.xlu0 %577
      %579 = vrot.lane.b32.xlu0 %v545, 8
      %v580 = vpop.permute.xlu0 %579
      %581 = vrot.lane.b32.xlu0 %v544, 8
      %v582 = vpop.permute.xlu0 %581
      %583 = vrot.lane.b32.xlu0 %v548, 8
      %v584 = vpop.permute.xlu0 %583
      %585 = vrot.lane.b32.xlu0 %v547, 8
      %v586 = vpop.permute.xlu0 %585
      %587 = vrot.lane.b32.xlu0 %v551, 8
      %v588 = vpop.permute.xlu0 %587
      %589 = vrot.lane.b32.xlu0 %v550, 8
      %v590 = vpop.permute.xlu0 %589
      %591 = vrot.lane.b32.xlu0 %v554, 8
      %v592 = vpop.permute.xlu0 %591
      %593 = vrot.lane.b32.xlu0 %v553, 8
      %v594 = vpop.permute.xlu0 %593
      %vm595 = vcmask 31744
      %v597 = vsel %vm595, %v313, %v485
      %v599 = vsel %vm595, %v314, %v487
      %v601 = vsel %vm595, %v315, %v489
      %v603 = vsel %vm595, %v316, %v491
      %v605 = vsel %vm595, %v317, %v493
      %v607 = vsel %vm595, %v318, %v495
      %v609 = vsel %vm595, %v319, %v497
      %v611 = vsel %vm595, %v320, %v499
      %v613 = vsel %vm595, %v321, %v501
      %v615 = vsel %vm595, %v322, %v503
      %v617 = vsel %vm595, %v323, %v505
      %v619 = vsel %vm595, %v324, %v507
      %v621 = vsel %vm595, %v325, %v509
      %v623 = vsel %vm595, %v326, %v511
      %v625 = vsel %vm595, %v327, %v513
      %v627 = vsel %vm595, %v328, %v515
      %v629 = vsel %vm595, %v329, %v517
      %v631 = vsel %vm595, %v330, %v519
      %v633 = vsel %vm595, %v331, %v521
      %v635 = vsel %vm595, %v332, %v523
      %vm636 = vcmask 64512
      %v638 = vsel %vm636, %v597, %v556
      %v640 = vsel %vm636, %v599, %v558
      %v642 = vsel %vm636, %v601, %v560
      %v644 = vsel %vm636, %v603, %v562
      %v646 = vsel %vm636, %v605, %v564
      %v648 = vsel %vm636, %v607, %v566
      %v650 = vsel %vm636, %v609, %v568
      %v652 = vsel %vm636, %v611, %v570
      %v654 = vsel %vm636, %v613, %v572
      %v656 = vsel %vm636, %v615, %v574
      %v658 = vsel %vm636, %v617, %v576
      %v660 = vsel %vm636, %v619, %v578
      %v662 = vsel %vm636, %v621, %v580
      %v664 = vsel %vm636, %v623, %v582
      %v666 = vsel %vm636, %v625, %v584
      %v668 = vsel %vm636, %v627, %v586
      %v670 = vsel %vm636, %v629, %v588
      %v672 = vsel %vm636, %v631, %v590
      %v674 = vsel %vm636, %v633, %v592
      %v676 = vsel %vm636, %v635, %v594
      %693 = vrot.lane.b32.xlu0 %v642, 12
      %v694 = vpop.permute.xlu0 %693
      %695 = vrot.lane.b32.xlu0 %v644, 12
      %v696 = vpop.permute.xlu0 %695
      %697 = vrot.lane.b32.xlu0 %v646, 12
      %v698 = vpop.permute.xlu0 %697
      %699 = vrot.lane.b32.xlu0 %v648, 12
      %v700 = vpop.permute.xlu0 %699
      %701 = vrot.lane.b32.xlu0 %v650, 12
      %v702 = vpop.permute.xlu0 %701
      %703 = vrot.lane.b32.xlu0 %v652, 12
      %v704 = vpop.permute.xlu0 %703
      %705 = vrot.lane.b32.xlu0 %v654, 12
      %v706 = vpop.permute.xlu0 %705
      %707 = vrot.lane.b32.xlu0 %v656, 12
      %v708 = vpop.permute.xlu0 %707
      %709 = vrot.lane.b32.xlu0 %v658, 12
      %v710 = vpop.permute.xlu0 %709
      %711 = vrot.lane.b32.xlu0 %v660, 12
      %v712 = vpop.permute.xlu0 %711
      %713 = vrot.lane.b32.xlu0 %v662, 12
      %v714 = vpop.permute.xlu0 %713
      %715 = vrot.lane.b32.xlu0 %v664, 12
      %v716 = vpop.permute.xlu0 %715
      %717 = vrot.lane.b32.xlu0 %v666, 12
      %v718 = vpop.permute.xlu0 %717
      %719 = vrot.lane.b32.xlu0 %v668, 12
      %v720 = vpop.permute.xlu0 %719
      %721 = vrot.lane.b32.xlu0 %v670, 12
      %v722 = vpop.permute.xlu0 %721
      %723 = vrot.lane.b32.xlu0 %v672, 12
      %v724 = vpop.permute.xlu0 %723
      %727 = vrot.lane.b32.xlu0 %v646, 24
      %v728 = vpop.permute.xlu0 %727
      %729 = vrot.lane.b32.xlu0 %v648, 24
      %v730 = vpop.permute.xlu0 %729
      %731 = vrot.lane.b32.xlu0 %v650, 24
      %v732 = vpop.permute.xlu0 %731
      %733 = vrot.lane.b32.xlu0 %v652, 24
      %v734 = vpop.permute.xlu0 %733
      %735 = vrot.lane.b32.xlu0 %v654, 24
      %v736 = vpop.permute.xlu0 %735
      %737 = vrot.lane.b32.xlu0 %v656, 24
      %v738 = vpop.permute.xlu0 %737
      %739 = vrot.lane.b32.xlu0 %v658, 24
      %v740 = vpop.permute.xlu0 %739
      %741 = vrot.lane.b32.xlu0 %v660, 24
      %v742 = vpop.permute.xlu0 %741
      %743 = vrot.lane.b32.xlu0 %v662, 24
      %v744 = vpop.permute.xlu0 %743
      %745 = vrot.lane.b32.xlu0 %v664, 24
      %v746 = vpop.permute.xlu0 %745
      %747 = vrot.lane.b32.xlu0 %v666, 24
      %v748 = vpop.permute.xlu0 %747
      %749 = vrot.lane.b32.xlu0 %v668, 24
      %v750 = vpop.permute.xlu0 %749
      %751 = vrot.lane.b32.xlu0 %v670, 24
      %v752 = vpop.permute.xlu0 %751
      %753 = vrot.lane.b32.xlu0 %v672, 24
      %v754 = vpop.permute.xlu0 %753
      %755 = vrot.lane.b32.xlu0 %v674, 24
      %v756 = vpop.permute.xlu0 %755
      %757 = vrot.lane.b32.xlu0 %v676, 24
      %v758 = vpop.permute.xlu0 %757
      %vm759 = vcmask 97280
      %v761 = vsel %vm759, %v638, %v694
      %v763 = vsel %vm759, %v640, %v696
      %v765 = vsel %vm759, %v642, %v698
      %v767 = vsel %vm759, %v644, %v700
      %v769 = vsel %vm759, %v646, %v702
      %v771 = vsel %vm759, %v648, %v704
      %v773 = vsel %vm759, %v650, %v706
      %v775 = vsel %vm759, %v652, %v708
      %v777 = vsel %vm759, %v654, %v710
      %v779 = vsel %vm759, %v656, %v712
      %v781 = vsel %vm759, %v658, %v714
      %v783 = vsel %vm759, %v660, %v716
      %v785 = vsel %vm759, %v662, %v718
      %v787 = vsel %vm759, %v664, %v720
      %v789 = vsel %vm759, %v666, %v722
      %v791 = vsel %vm759, %v668, %v724
      %vm792 = vcmask 195584
      %v794 = vsel %vm792, %v761, %v728
      %v796 = vsel %vm792, %v763, %v730
      %v798 = vsel %vm792, %v765, %v732
      %v800 = vsel %vm792, %v767, %v734
      %v802 = vsel %vm792, %v769, %v736
      %v804 = vsel %vm792, %v771, %v738
      %v806 = vsel %vm792, %v773, %v740
      %v808 = vsel %vm792, %v775, %v742
      %v810 = vsel %vm792, %v777, %v744
      %v812 = vsel %vm792, %v779, %v746
      %v814 = vsel %vm792, %v781, %v748
      %v816 = vsel %vm792, %v783, %v750
      %v818 = vsel %vm792, %v785, %v752
      %v820 = vsel %vm792, %v787, %v754
      %v822 = vsel %vm792, %v789, %v756
      %v824 = vsel %vm792, %v791, %v758
      %v831 = vunpack.c.l.b16 %v211
      %v832 = vunpack.c.l.b16 %v212
      %v833 = vunpack.c.l.b16 %v213
      %v834 = vunpack.c.l.b16 %v244
      %v835 = vunpack.c.l.b16 %v245
      %v836 = vunpack.c.l.b16 %v246
      %v837 = vpack.c.b16 %v832, %v831
      %v838 = vpack.c.b16 %v833, %v833
      %v839 = vpack.c.b16 %v835, %v834
      %v840 = vpack.c.b16 %v836, %v836
      %v841 = vrot.slane %v837, 1
      %v842 = vrot.slane %v838, 1
      %v843 = vsel %vm524, %v841, %v842
      %v844 = vrot.slane %v839, 1
      %v845 = vrot.slane %v840, 1
      %v846 = vsel %vm524, %v844, %v845
      %847 = vrot.lane.b32.xlu0 %v843, 4
      %v848 = vpop.permute.xlu0 %847
      %849 = vrot.lane.b32.xlu0 %v842, 4
      %v850 = vpop.permute.xlu0 %849
      %851 = vrot.lane.b32.xlu0 %v527, 4
      %v852 = vpop.permute.xlu0 %851
      %853 = vrot.lane.b32.xlu0 %v526, 4
      %v854 = vpop.permute.xlu0 %853
      %855 = vrot.lane.b32.xlu0 %v530, 4
      %v856 = vpop.permute.xlu0 %855
      %857 = vrot.lane.b32.xlu0 %v529, 4
      %v858 = vpop.permute.xlu0 %857
      %859 = vrot.lane.b32.xlu0 %v533, 4
      %v860 = vpop.permute.xlu0 %859
      %861 = vrot.lane.b32.xlu0 %v532, 4
      %v862 = vpop.permute.xlu0 %861
      %863 = vrot.lane.b32.xlu0 %v536, 4
      %v864 = vpop.permute.xlu0 %863
      %865 = vrot.lane.b32.xlu0 %v535, 4
      %v866 = vpop.permute.xlu0 %865
      %867 = vrot.lane.b32.xlu0 %v539, 4
      %v868 = vpop.permute.xlu0 %867
      %869 = vrot.lane.b32.xlu0 %v538, 4
      %v870 = vpop.permute.xlu0 %869
      %871 = vrot.lane.b32.xlu0 %v542, 4
      %v872 = vpop.permute.xlu0 %871
      %873 = vrot.lane.b32.xlu0 %v541, 4
      %v874 = vpop.permute.xlu0 %873
      %875 = vrot.lane.b32.xlu0 %v545, 4
      %v876 = vpop.permute.xlu0 %875
      %877 = vrot.lane.b32.xlu0 %v544, 4
      %v878 = vpop.permute.xlu0 %877
      %879 = vrot.lane.b32.xlu0 %v548, 4
      %v880 = vpop.permute.xlu0 %879
      %881 = vrot.lane.b32.xlu0 %v547, 4
      %v882 = vpop.permute.xlu0 %881
      %883 = vrot.lane.b32.xlu0 %v551, 4
      %v884 = vpop.permute.xlu0 %883
      %885 = vrot.lane.b32.xlu0 %v550, 4
      %v886 = vpop.permute.xlu0 %885
      %887 = vrot.lane.b32.xlu0 %v554, 4
      %v888 = vpop.permute.xlu0 %887
      %889 = vrot.lane.b32.xlu0 %v553, 4
      %v890 = vpop.permute.xlu0 %889
      %891 = vrot.lane.b32.xlu0 %v846, 4
      %v892 = vpop.permute.xlu0 %891
      %893 = vrot.lane.b32.xlu0 %v845, 4
      %v894 = vpop.permute.xlu0 %893
      %vm895 = vcmask 1045504
      %v896 = vrot.slane %v837, 2
      %v897 = vrot.slane %v838, 2
      %v898 = vsel %vm895, %v896, %v897
      %v899 = vrot.slane %v313, 2
      %v900 = vrot.slane %v314, 2
      %v901 = vsel %vm895, %v899, %v900
      %v902 = vrot.slane %v315, 2
      %v903 = vrot.slane %v316, 2
      %v904 = vsel %vm895, %v902, %v903
      %v905 = vrot.slane %v317, 2
      %v906 = vrot.slane %v318, 2
      %v907 = vsel %vm895, %v905, %v906
      %v908 = vrot.slane %v319, 2
      %v909 = vrot.slane %v320, 2
      %v910 = vsel %vm895, %v908, %v909
      %v911 = vrot.slane %v321, 2
      %v912 = vrot.slane %v322, 2
      %v913 = vsel %vm895, %v911, %v912
      %v914 = vrot.slane %v323, 2
      %v915 = vrot.slane %v324, 2
      %v916 = vsel %vm895, %v914, %v915
      %v917 = vrot.slane %v325, 2
      %v918 = vrot.slane %v326, 2
      %v919 = vsel %vm895, %v917, %v918
      %v920 = vrot.slane %v327, 2
      %v921 = vrot.slane %v328, 2
      %v922 = vsel %vm895, %v920, %v921
      %v923 = vrot.slane %v329, 2
      %v924 = vrot.slane %v330, 2
      %v925 = vsel %vm895, %v923, %v924
      %v926 = vrot.slane %v331, 2
      %v927 = vrot.slane %v332, 2
      %v928 = vsel %vm895, %v926, %v927
      %v929 = vrot.slane %v839, 2
      %v930 = vrot.slane %v840, 2
      %v931 = vsel %vm895, %v929, %v930
      %932 = vrot.lane.b32.xlu0 %v898, 8
      %v933 = vpop.permute.xlu0 %932
      %934 = vrot.lane.b32.xlu0 %v897, 8
      %v935 = vpop.permute.xlu0 %934
      %936 = vrot.lane.b32.xlu0 %v901, 8
      %v937 = vpop.permute.xlu0 %936
      %938 = vrot.lane.b32.xlu0 %v900, 8
      %v939 = vpop.permute.xlu0 %938
      %940 = vrot.lane.b32.xlu0 %v904, 8
      %v941 = vpop.permute.xlu0 %940
      %942 = vrot.lane.b32.xlu0 %v903, 8
      %v943 = vpop.permute.xlu0 %942
      %944 = vrot.lane.b32.xlu0 %v907, 8
      %v945 = vpop.permute.xlu0 %944
      %946 = vrot.lane.b32.xlu0 %v906, 8
      %v947 = vpop.permute.xlu0 %946
      %948 = vrot.lane.b32.xlu0 %v910, 8
      %v949 = vpop.permute.xlu0 %948
      %950 = vrot.lane.b32.xlu0 %v909, 8
      %v951 = vpop.permute.xlu0 %950
      %952 = vrot.lane.b32.xlu0 %v913, 8
      %v953 = vpop.permute.xlu0 %952
      %954 = vrot.lane.b32.xlu0 %v912, 8
      %v955 = vpop.permute.xlu0 %954
      %956 = vrot.lane.b32.xlu0 %v916, 8
      %v957 = vpop.permute.xlu0 %956
      %958 = vrot.lane.b32.xlu0 %v915, 8
      %v959 = vpop.permute.xlu0 %958
      %960 = vrot.lane.b32.xlu0 %v919, 8
      %v961 = vpop.permute.xlu0 %960
      %962 = vrot.lane.b32.xlu0 %v918, 8
      %v963 = vpop.permute.xlu0 %962
      %964 = vrot.lane.b32.xlu0 %v922, 8
      %v965 = vpop.permute.xlu0 %964
      %966 = vrot.lane.b32.xlu0 %v921, 8
      %v967 = vpop.permute.xlu0 %966
      %968 = vrot.lane.b32.xlu0 %v925, 8
      %v969 = vpop.permute.xlu0 %968
      %970 = vrot.lane.b32.xlu0 %v924, 8
      %v971 = vpop.permute.xlu0 %970
      %972 = vrot.lane.b32.xlu0 %v928, 8
      %v973 = vpop.permute.xlu0 %972
      %974 = vrot.lane.b32.xlu0 %v927, 8
      %v975 = vpop.permute.xlu0 %974
      %976 = vrot.lane.b32.xlu0 %v931, 8
      %v977 = vpop.permute.xlu0 %976
      %978 = vrot.lane.b32.xlu0 %v930, 8
      %v979 = vpop.permute.xlu0 %978
      %v982 = vsel %vm595, %v837, %v848
      %v985 = vsel %vm595, %v838, %v850
      %v987 = vsel %vm595, %v313, %v852
      %v989 = vsel %vm595, %v314, %v854
      %v991 = vsel %vm595, %v315, %v856
      %v993 = vsel %vm595, %v316, %v858
      %v995 = vsel %vm595, %v317, %v860
      %v997 = vsel %vm595, %v318, %v862
      %v999 = vsel %vm595, %v319, %v864
      %v1001 = vsel %vm595, %v320, %v866
      %v1003 = vsel %vm595, %v321, %v868
      %v1005 = vsel %vm595, %v322, %v870
      %v1007 = vsel %vm595, %v323, %v872
      %v1009 = vsel %vm595, %v324, %v874
      %v1011 = vsel %vm595, %v325, %v876
      %v1013 = vsel %vm595, %v326, %v878
      %v1015 = vsel %vm595, %v327, %v880
      %v1017 = vsel %vm595, %v328, %v882
      %v1019 = vsel %vm595, %v329, %v884
      %v1021 = vsel %vm595, %v330, %v886
      %v1023 = vsel %vm595, %v331, %v888
      %v1025 = vsel %vm595, %v332, %v890
      %v1028 = vsel %vm595, %v839, %v892
      %v1031 = vsel %vm595, %v840, %v894
      %v1033 = vsel %vm636, %v982, %v933
      %v1035 = vsel %vm636, %v985, %v935
      %v1037 = vsel %vm636, %v987, %v937
      %v1039 = vsel %vm636, %v989, %v939
      %v1041 = vsel %vm636, %v991, %v941
      %v1043 = vsel %vm636, %v993, %v943
      %v1045 = vsel %vm636, %v995, %v945
      %v1047 = vsel %vm636, %v997, %v947
      %v1049 = vsel %vm636, %v999, %v949
      %v1051 = vsel %vm636, %v1001, %v951
      %v1053 = vsel %vm636, %v1003, %v953
      %v1055 = vsel %vm636, %v1005, %v955
      %v1057 = vsel %vm636, %v1007, %v957
      %v1059 = vsel %vm636, %v1009, %v959
      %v1061 = vsel %vm636, %v1011, %v961
      %v1063 = vsel %vm636, %v1013, %v963
      %v1065 = vsel %vm636, %v1015, %v965
      %v1067 = vsel %vm636, %v1017, %v967
      %v1069 = vsel %vm636, %v1019, %v969
      %v1071 = vsel %vm636, %v1021, %v971
      %v1073 = vsel %vm636, %v1023, %v973
      %v1075 = vsel %vm636, %v1025, %v975
      %v1077 = vsel %vm636, %v1028, %v977
      %v1079 = vsel %vm636, %v1031, %v979
      %1096 = vrot.lane.b32.xlu0 %v1041, 12
      %v1097 = vpop.permute.xlu0 %1096
      %1098 = vrot.lane.b32.xlu0 %v1043, 12
      %v1099 = vpop.permute.xlu0 %1098
      %1100 = vrot.lane.b32.xlu0 %v1045, 12
      %v1101 = vpop.permute.xlu0 %1100
      %1102 = vrot.lane.b32.xlu0 %v1047, 12
      %v1103 = vpop.permute.xlu0 %1102
      %1104 = vrot.lane.b32.xlu0 %v1049, 12
      %v1105 = vpop.permute.xlu0 %1104
      %1106 = vrot.lane.b32.xlu0 %v1051, 12
      %v1107 = vpop.permute.xlu0 %1106
      %1108 = vrot.lane.b32.xlu0 %v1053, 12
      %v1109 = vpop.permute.xlu0 %1108
      %1110 = vrot.lane.b32.xlu0 %v1055, 12
      %v1111 = vpop.permute.xlu0 %1110
      %1112 = vrot.lane.b32.xlu0 %v1057, 12
      %v1113 = vpop.permute.xlu0 %1112
      %1114 = vrot.lane.b32.xlu0 %v1059, 12
      %v1115 = vpop.permute.xlu0 %1114
      %1116 = vrot.lane.b32.xlu0 %v1061, 12
      %v1117 = vpop.permute.xlu0 %1116
      %1118 = vrot.lane.b32.xlu0 %v1063, 12
      %v1119 = vpop.permute.xlu0 %1118
      %1120 = vrot.lane.b32.xlu0 %v1065, 12
      %v1121 = vpop.permute.xlu0 %1120
      %1122 = vrot.lane.b32.xlu0 %v1067, 12
      %v1123 = vpop.permute.xlu0 %1122
      %1124 = vrot.lane.b32.xlu0 %v1069, 12
      %v1125 = vpop.permute.xlu0 %1124
      %1126 = vrot.lane.b32.xlu0 %v1071, 12
      %v1127 = vpop.permute.xlu0 %1126
      %1132 = vrot.lane.b32.xlu0 %v1049, 24
      %v1133 = vpop.permute.xlu0 %1132
      %1134 = vrot.lane.b32.xlu0 %v1051, 24
      %v1135 = vpop.permute.xlu0 %1134
      %1136 = vrot.lane.b32.xlu0 %v1053, 24
      %v1137 = vpop.permute.xlu0 %1136
      %1138 = vrot.lane.b32.xlu0 %v1055, 24
      %v1139 = vpop.permute.xlu0 %1138
      %1140 = vrot.lane.b32.xlu0 %v1057, 24
      %v1141 = vpop.permute.xlu0 %1140
      %1142 = vrot.lane.b32.xlu0 %v1059, 24
      %v1143 = vpop.permute.xlu0 %1142
      %1144 = vrot.lane.b32.xlu0 %v1061, 24
      %v1145 = vpop.permute.xlu0 %1144
      %1146 = vrot.lane.b32.xlu0 %v1063, 24
      %v1147 = vpop.permute.xlu0 %1146
      %1148 = vrot.lane.b32.xlu0 %v1065, 24
      %v1149 = vpop.permute.xlu0 %1148
      %1150 = vrot.lane.b32.xlu0 %v1067, 24
      %v1151 = vpop.permute.xlu0 %1150
      %1152 = vrot.lane.b32.xlu0 %v1069, 24
      %v1153 = vpop.permute.xlu0 %1152
      %1154 = vrot.lane.b32.xlu0 %v1071, 24
      %v1155 = vpop.permute.xlu0 %1154
      %1156 = vrot.lane.b32.xlu0 %v1073, 24
      %v1157 = vpop.permute.xlu0 %1156
      %1158 = vrot.lane.b32.xlu0 %v1075, 24
      %v1159 = vpop.permute.xlu0 %1158
      %1160 = vrot.lane.b32.xlu0 %v1077, 24
      %v1161 = vpop.permute.xlu0 %1160
      %1162 = vrot.lane.b32.xlu0 %v1079, 24
      %v1163 = vpop.permute.xlu0 %1162
      %v1165 = vsel %vm759, %v1033, %v1097
      %v1167 = vsel %vm759, %v1035, %v1099
      %v1169 = vsel %vm759, %v1037, %v1101
      %v1171 = vsel %vm759, %v1039, %v1103
      %v1173 = vsel %vm759, %v1041, %v1105
      %v1175 = vsel %vm759, %v1043, %v1107
      %v1177 = vsel %vm759, %v1045, %v1109
      %v1179 = vsel %vm759, %v1047, %v1111
      %v1181 = vsel %vm759, %v1049, %v1113
      %v1183 = vsel %vm759, %v1051, %v1115
      %v1185 = vsel %vm759, %v1053, %v1117
      %v1187 = vsel %vm759, %v1055, %v1119
      %v1189 = vsel %vm759, %v1057, %v1121
      %v1191 = vsel %vm759, %v1059, %v1123
      %v1193 = vsel %vm759, %v1061, %v1125
      %v1195 = vsel %vm759, %v1063, %v1127
      %v1197 = vsel %vm792, %v1165, %v1133
      %v1199 = vsel %vm792, %v1167, %v1135
      %v1201 = vsel %vm792, %v1169, %v1137
      %v1203 = vsel %vm792, %v1171, %v1139
      %v1205 = vsel %vm792, %v1173, %v1141
      %v1207 = vsel %vm792, %v1175, %v1143
      %v1209 = vsel %vm792, %v1177, %v1145
      %v1211 = vsel %vm792, %v1179, %v1147
      %v1213 = vsel %vm792, %v1181, %v1149
      %v1215 = vsel %vm792, %v1183, %v1151
      %v1217 = vsel %vm792, %v1185, %v1153
      %v1219 = vsel %vm792, %v1187, %v1155
      %v1221 = vsel %vm792, %v1189, %v1157
      %v1223 = vsel %vm792, %v1191, %v1159
      %v1225 = vsel %vm792, %v1193, %v1161
      %v1227 = vsel %vm792, %v1195, %v1163
      %v1236 = vunpack.c.l.b16 %v205
      %v1237 = vunpack.c.l.b16 %v206
      %v1238 = vunpack.c.l.b16 %v208
      %v1239 = vunpack.c.l.b16 %v209
      %v1240 = vunpack.c.l.b16 %v247
      %v1241 = vunpack.c.l.b16 %v248
      %v1242 = vunpack.c.l.b16 %v250
      %v1243 = vunpack.c.l.b16 %v251
      %v1244 = vpack.c.b16 %v1237, %v1236
      %v1245 = vpack.c.b16 %v1239, %v1238
      %v1246 = vpack.c.b16 %v1241, %v1240
      %v1247 = vpack.c.b16 %v1243, %v1242
      %v1252 = vunpack.c.l.b16 %v207
      %v1253 = vunpack.c.l.b16 %v210
      %v1254 = vunpack.c.l.b16 %v249
      %v1255 = vunpack.c.l.b16 %v252
      %v1256 = vpack.c.b16 %v1252, %v1252
      %v1257 = vpack.c.b16 %v1253, %v1253
      %v1258 = vpack.c.b16 %v1254, %v1254
      %v1259 = vpack.c.b16 %v1255, %v1255
      %v1260 = vrot.slane %v1244, 2
      %v1261 = vrot.slane %v1256, 2
      %v1262 = vsel %vm895, %v1260, %v1261
      %v1263 = vrot.slane %v1245, 2
      %v1264 = vrot.slane %v1257, 2
      %v1265 = vsel %vm895, %v1263, %v1264
      %v1266 = vrot.slane %v1246, 2
      %v1267 = vrot.slane %v1258, 2
      %v1268 = vsel %vm895, %v1266, %v1267
      %v1269 = vrot.slane %v1247, 2
      %v1270 = vrot.slane %v1259, 2
      %v1271 = vsel %vm895, %v1269, %v1270
      %1272 = vrot.lane.b32.xlu0 %v1262, 4
      %v1273 = vpop.permute.xlu0 %1272
      %1274 = vrot.lane.b32.xlu0 %v1265, 4
      %v1275 = vpop.permute.xlu0 %1274
      %1276 = vrot.lane.b32.xlu0 %v898, 4
      %v1277 = vpop.permute.xlu0 %1276
      %1278 = vrot.lane.b32.xlu0 %v901, 4
      %v1279 = vpop.permute.xlu0 %1278
      %1280 = vrot.lane.b32.xlu0 %v904, 4
      %v1281 = vpop.permute.xlu0 %1280
      %1282 = vrot.lane.b32.xlu0 %v907, 4
      %v1283 = vpop.permute.xlu0 %1282
      %1284 = vrot.lane.b32.xlu0 %v910, 4
      %v1285 = vpop.permute.xlu0 %1284
      %1286 = vrot.lane.b32.xlu0 %v913, 4
      %v1287 = vpop.permute.xlu0 %1286
      %1288 = vrot.lane.b32.xlu0 %v916, 4
      %v1289 = vpop.permute.xlu0 %1288
      %1290 = vrot.lane.b32.xlu0 %v919, 4
      %v1291 = vpop.permute.xlu0 %1290
      %1292 = vrot.lane.b32.xlu0 %v922, 4
      %v1293 = vpop.permute.xlu0 %1292
      %1294 = vrot.lane.b32.xlu0 %v925, 4
      %v1295 = vpop.permute.xlu0 %1294
      %1296 = vrot.lane.b32.xlu0 %v928, 4
      %v1297 = vpop.permute.xlu0 %1296
      %1298 = vrot.lane.b32.xlu0 %v931, 4
      %v1299 = vpop.permute.xlu0 %1298
      %1300 = vrot.lane.b32.xlu0 %v1268, 4
      %v1301 = vpop.permute.xlu0 %1300
      %1302 = vrot.lane.b32.xlu0 %v1271, 4
      %v1303 = vpop.permute.xlu0 %1302
      %v1304 = vpack.c.b16 %v1252, %v1237
      %v1305 = vpack.c.b16 %v1253, %v1239
      %v1306 = vpack.c.b16 %v833, %v832
      %v1307 = vpack.c.b16 %v285, %v284
      %v1308 = vpack.c.b16 %v288, %v287
      %v1309 = vpack.c.b16 %v291, %v290
      %v1310 = vpack.c.b16 %v294, %v293
      %v1311 = vpack.c.b16 %v297, %v296
      %v1312 = vpack.c.b16 %v300, %v299
      %v1313 = vpack.c.b16 %v303, %v302
      %v1314 = vpack.c.b16 %v306, %v305
      %v1315 = vpack.c.b16 %v309, %v308
      %v1316 = vpack.c.b16 %v312, %v311
      %v1317 = vpack.c.b16 %v836, %v835
      %v1318 = vpack.c.b16 %v1254, %v1241
      %v1319 = vpack.c.b16 %v1255, %v1243
      %1320 = vrot.lane.b32.xlu0 %v1304, 8
      %v1321 = vpop.permute.xlu0 %1320
      %1322 = vrot.lane.b32.xlu0 %v1305, 8
      %v1323 = vpop.permute.xlu0 %1322
      %1324 = vrot.lane.b32.xlu0 %v1306, 8
      %v1325 = vpop.permute.xlu0 %1324
      %1326 = vrot.lane.b32.xlu0 %v1307, 8
      %v1327 = vpop.permute.xlu0 %1326
      %1328 = vrot.lane.b32.xlu0 %v1308, 8
      %v1329 = vpop.permute.xlu0 %1328
      %1330 = vrot.lane.b32.xlu0 %v1309, 8
      %v1331 = vpop.permute.xlu0 %1330
      %1332 = vrot.lane.b32.xlu0 %v1310, 8
      %v1333 = vpop.permute.xlu0 %1332
      %1334 = vrot.lane.b32.xlu0 %v1311, 8
      %v1335 = vpop.permute.xlu0 %1334
      %1336 = vrot.lane.b32.xlu0 %v1312, 8
      %v1337 = vpop.permute.xlu0 %1336
      %1338 = vrot.lane.b32.xlu0 %v1313, 8
      %v1339 = vpop.permute.xlu0 %1338
      %1340 = vrot.lane.b32.xlu0 %v1314, 8
      %v1341 = vpop.permute.xlu0 %1340
      %1342 = vrot.lane.b32.xlu0 %v1315, 8
      %v1343 = vpop.permute.xlu0 %1342
      %1344 = vrot.lane.b32.xlu0 %v1316, 8
      %v1345 = vpop.permute.xlu0 %1344
      %1346 = vrot.lane.b32.xlu0 %v1317, 8
      %v1347 = vpop.permute.xlu0 %1346
      %1348 = vrot.lane.b32.xlu0 %v1318, 8
      %v1349 = vpop.permute.xlu0 %1348
      %1350 = vrot.lane.b32.xlu0 %v1319, 8
      %v1351 = vpop.permute.xlu0 %1350
      %v1354 = vsel %vm595, %v1244, %v1273
      %v1357 = vsel %vm595, %v1245, %v1275
      %v1359 = vsel %vm595, %v837, %v1277
      %v1361 = vsel %vm595, %v313, %v1279
      %v1363 = vsel %vm595, %v315, %v1281
      %v1365 = vsel %vm595, %v317, %v1283
      %v1367 = vsel %vm595, %v319, %v1285
      %v1369 = vsel %vm595, %v321, %v1287
      %v1371 = vsel %vm595, %v323, %v1289
      %v1373 = vsel %vm595, %v325, %v1291
      %v1375 = vsel %vm595, %v327, %v1293
      %v1377 = vsel %vm595, %v329, %v1295
      %v1379 = vsel %vm595, %v331, %v1297
      %v1381 = vsel %vm595, %v839, %v1299
      %v1384 = vsel %vm595, %v1246, %v1301
      %v1387 = vsel %vm595, %v1247, %v1303
      %v1389 = vsel %vm636, %v1354, %v1321
      %v1391 = vsel %vm636, %v1357, %v1323
      %v1393 = vsel %vm636, %v1359, %v1325
      %v1395 = vsel %vm636, %v1361, %v1327
      %v1397 = vsel %vm636, %v1363, %v1329
      %v1399 = vsel %vm636, %v1365, %v1331
      %v1401 = vsel %vm636, %v1367, %v1333
      %v1403 = vsel %vm636, %v1369, %v1335
      %v1405 = vsel %vm636, %v1371, %v1337
      %v1407 = vsel %vm636, %v1373, %v1339
      %v1409 = vsel %vm636, %v1375, %v1341
      %v1411 = vsel %vm636, %v1377, %v1343
      %v1413 = vsel %vm636, %v1379, %v1345
      %v1415 = vsel %vm636, %v1381, %v1347
      %v1417 = vsel %vm636, %v1384, %v1349
      %v1419 = vsel %vm636, %v1387, %v1351
      %1428 = vrot.lane.b32.xlu0 %v1397, 12
      %v1429 = vpop.permute.xlu0 %1428
      %1430 = vrot.lane.b32.xlu0 %v1399, 12
      %v1431 = vpop.permute.xlu0 %1430
      %1432 = vrot.lane.b32.xlu0 %v1401, 12
      %v1433 = vpop.permute.xlu0 %1432
      %1434 = vrot.lane.b32.xlu0 %v1403, 12
      %v1435 = vpop.permute.xlu0 %1434
      %1436 = vrot.lane.b32.xlu0 %v1405, 12
      %v1437 = vpop.permute.xlu0 %1436
      %1438 = vrot.lane.b32.xlu0 %v1407, 12
      %v1439 = vpop.permute.xlu0 %1438
      %1440 = vrot.lane.b32.xlu0 %v1409, 12
      %v1441 = vpop.permute.xlu0 %1440
      %1442 = vrot.lane.b32.xlu0 %v1411, 12
      %v1443 = vpop.permute.xlu0 %1442
      %1448 = vrot.lane.b32.xlu0 %v1405, 24
      %v1449 = vpop.permute.xlu0 %1448
      %1450 = vrot.lane.b32.xlu0 %v1407, 24
      %v1451 = vpop.permute.xlu0 %1450
      %1452 = vrot.lane.b32.xlu0 %v1409, 24
      %v1453 = vpop.permute.xlu0 %1452
      %1454 = vrot.lane.b32.xlu0 %v1411, 24
      %v1455 = vpop.permute.xlu0 %1454
      %1456 = vrot.lane.b32.xlu0 %v1413, 24
      %v1457 = vpop.permute.xlu0 %1456
      %1458 = vrot.lane.b32.xlu0 %v1415, 24
      %v1459 = vpop.permute.xlu0 %1458
      %1460 = vrot.lane.b32.xlu0 %v1417, 24
      %v1461 = vpop.permute.xlu0 %1460
      %1462 = vrot.lane.b32.xlu0 %v1419, 24
      %v1463 = vpop.permute.xlu0 %1462
      %v1465 = vsel %vm759, %v1389, %v1429
      %v1467 = vsel %vm759, %v1391, %v1431
      %v1469 = vsel %vm759, %v1393, %v1433
      %v1471 = vsel %vm759, %v1395, %v1435
      %v1473 = vsel %vm759, %v1397, %v1437
      %v1475 = vsel %vm759, %v1399, %v1439
      %v1477 = vsel %vm759, %v1401, %v1441
      %v1479 = vsel %vm759, %v1403, %v1443
      %v1481 = vsel %vm792, %v1465, %v1449
      %v1483 = vsel %vm792, %v1467, %v1451
      %v1485 = vsel %vm792, %v1469, %v1453
      %v1487 = vsel %vm792, %v1471, %v1455
      %v1489 = vsel %vm792, %v1473, %v1457
      %v1491 = vsel %vm792, %v1475, %v1459
      %v1493 = vsel %vm792, %v1477, %v1461
      %v1495 = vsel %vm792, %v1479, %v1463
      %vm1496 = vsmask.f32 256
      %v1497 = vshrl.u32 %v1197, 16
      %v1499 = vrot.slane %v1497, 7
      %v1500 = vshll.u32 %v1197, 16
      %v1502 = vor.u32 %v1499, %v1500
      %v1503 = vshrl.u32 %v1199, 16
      %v1505 = vrot.slane %v1503, 7
      %v1506 = vshll.u32 %v1199, 16
      %v1508 = vor.u32 %v1505, %v1506
      %v1509 = vsel %vm1496, %v1499, %v1508
      %v1510 = vshrl.u32 %v1201, 16
      %v1512 = vrot.slane %v1510, 7
      %v1513 = vshll.u32 %v1201, 16
      %v1515 = vor.u32 %v1512, %v1513
      %v1516 = vshrl.u32 %v1203, 16
      %v1518 = vrot.slane %v1516, 7
      %v1519 = vshll.u32 %v1203, 16
      %v1521 = vor.u32 %v1518, %v1519
      %v1522 = vsel %vm1496, %v1512, %v1521
      %v1523 = vshrl.u32 %v1205, 16
      %v1525 = vrot.slane %v1523, 7
      %v1526 = vshll.u32 %v1205, 16
      %v1528 = vor.u32 %v1525, %v1526
      %v1529 = vshrl.u32 %v1207, 16
      %v1531 = vrot.slane %v1529, 7
      %v1532 = vshll.u32 %v1207, 16
      %v1534 = vor.u32 %v1531, %v1532
      %v1535 = vsel %vm1496, %v1525, %v1534
      %v1536 = vshrl.u32 %v1209, 16
      %v1538 = vrot.slane %v1536, 7
      %v1539 = vshll.u32 %v1209, 16
      %v1541 = vor.u32 %v1538, %v1539
      %v1542 = vshrl.u32 %v1211, 16
      %v1544 = vrot.slane %v1542, 7
      %v1545 = vshll.u32 %v1211, 16
      %v1547 = vor.u32 %v1544, %v1545
      %v1548 = vsel %vm1496, %v1538, %v1547
      %v1549 = vshrl.u32 %v1213, 16
      %v1551 = vrot.slane %v1549, 7
      %v1552 = vshll.u32 %v1213, 16
      %v1554 = vor.u32 %v1551, %v1552
      %v1555 = vshrl.u32 %v1215, 16
      %v1557 = vrot.slane %v1555, 7
      %v1558 = vshll.u32 %v1215, 16
      %v1560 = vor.u32 %v1557, %v1558
      %v1561 = vsel %vm1496, %v1551, %v1560
      %v1562 = vshrl.u32 %v1217, 16
      %v1564 = vrot.slane %v1562, 7
      %v1565 = vshll.u32 %v1217, 16
      %v1567 = vor.u32 %v1564, %v1565
      %v1568 = vshrl.u32 %v1219, 16
      %v1570 = vrot.slane %v1568, 7
      %v1571 = vshll.u32 %v1219, 16
      %v1573 = vor.u32 %v1570, %v1571
      %v1574 = vsel %vm1496, %v1564, %v1573
      %v1575 = vshrl.u32 %v1221, 16
      %v1577 = vrot.slane %v1575, 7
      %v1578 = vshll.u32 %v1221, 16
      %v1580 = vor.u32 %v1577, %v1578
      %v1581 = vshrl.u32 %v1223, 16
      %v1583 = vrot.slane %v1581, 7
      %v1584 = vshll.u32 %v1223, 16
      %v1586 = vor.u32 %v1583, %v1584
      %v1587 = vsel %vm1496, %v1577, %v1586
      %v1588 = vshrl.u32 %v1225, 16
      %v1590 = vrot.slane %v1588, 7
      %v1591 = vshll.u32 %v1225, 16
      %v1593 = vor.u32 %v1590, %v1591
      %v1594 = vshrl.u32 %v1227, 16
      %v1596 = vrot.slane %v1594, 7
      %v1597 = vshll.u32 %v1227, 16
      %v1599 = vor.u32 %v1596, %v1597
      %v1600 = vsel %vm1496, %v1590, %v1599
      %1601 = vrot.lane.b32.xlu0 %v1502, 36
      %v1602 = vpop.permute.xlu0 %1601
      %1603 = vrot.lane.b32.xlu0 %v1509, 36
      %v1604 = vpop.permute.xlu0 %1603
      %1605 = vrot.lane.b32.xlu0 %v1515, 36
      %v1606 = vpop.permute.xlu0 %1605
      %1607 = vrot.lane.b32.xlu0 %v1522, 36
      %v1608 = vpop.permute.xlu0 %1607
      %1609 = vrot.lane.b32.xlu0 %v1528, 36
      %v1610 = vpop.permute.xlu0 %1609
      %1611 = vrot.lane.b32.xlu0 %v1535, 36
      %v1612 = vpop.permute.xlu0 %1611
      %1613 = vrot.lane.b32.xlu0 %v1541, 36
      %v1614 = vpop.permute.xlu0 %1613
      %1615 = vrot.lane.b32.xlu0 %v1548, 36
      %v1616 = vpop.permute.xlu0 %1615
      %1617 = vrot.lane.b32.xlu0 %v1554, 36
      %v1618 = vpop.permute.xlu0 %1617
      %1619 = vrot.lane.b32.xlu0 %v1561, 36
      %v1620 = vpop.permute.xlu0 %1619
      %1621 = vrot.lane.b32.xlu0 %v1567, 36
      %v1622 = vpop.permute.xlu0 %1621
      %1623 = vrot.lane.b32.xlu0 %v1574, 36
      %v1624 = vpop.permute.xlu0 %1623
      %1625 = vrot.lane.b32.xlu0 %v1580, 36
      %v1626 = vpop.permute.xlu0 %1625
      %1627 = vrot.lane.b32.xlu0 %v1587, 36
      %v1628 = vpop.permute.xlu0 %1627
      %1629 = vrot.lane.b32.xlu0 %v1593, 36
      %v1630 = vpop.permute.xlu0 %1629
      %1631 = vrot.lane.b32.xlu0 %v1600, 36
      %v1632 = vpop.permute.xlu0 %1631
      %v1633 = vshrl.u32 %v1481, 16
      %v1635 = vrot.slane %v1633, 6
      %v1636 = vshll.u32 %v1481, 16
      %v1638 = vrot.slane %v1636, 7
      %v1639 = vor.u32 %v1635, %v1638
      %v1640 = vshrl.u32 %v1483, 16
      %v1642 = vrot.slane %v1640, 6
      %v1643 = vshll.u32 %v1483, 16
      %v1645 = vrot.slane %v1643, 7
      %v1646 = vor.u32 %v1642, %v1645
      %v1647 = vshrl.u32 %v1485, 16
      %v1649 = vrot.slane %v1647, 6
      %v1650 = vshll.u32 %v1485, 16
      %v1652 = vrot.slane %v1650, 7
      %v1653 = vor.u32 %v1649, %v1652
      %v1654 = vshrl.u32 %v1487, 16
      %v1656 = vrot.slane %v1654, 6
      %v1657 = vshll.u32 %v1487, 16
      %v1659 = vrot.slane %v1657, 7
      %v1660 = vor.u32 %v1656, %v1659
      %v1661 = vshrl.u32 %v1489, 16
      %v1663 = vrot.slane %v1661, 6
      %v1664 = vshll.u32 %v1489, 16
      %v1666 = vrot.slane %v1664, 7
      %v1667 = vor.u32 %v1663, %v1666
      %v1668 = vshrl.u32 %v1491, 16
      %v1670 = vrot.slane %v1668, 6
      %v1671 = vshll.u32 %v1491, 16
      %v1673 = vrot.slane %v1671, 7
      %v1674 = vor.u32 %v1670, %v1673
      %v1675 = vshrl.u32 %v1493, 16
      %v1677 = vrot.slane %v1675, 6
      %v1678 = vshll.u32 %v1493, 16
      %v1680 = vrot.slane %v1678, 7
      %v1681 = vor.u32 %v1677, %v1680
      %v1682 = vshrl.u32 %v1495, 16
      %v1684 = vrot.slane %v1682, 6
      %v1685 = vshll.u32 %v1495, 16
      %v1687 = vrot.slane %v1685, 7
      %v1688 = vor.u32 %v1684, %v1687
      %1689 = vrot.lane.b32.xlu0 %v1639, 72
      %v1690 = vpop.permute.xlu0 %1689
      %1691 = vrot.lane.b32.xlu0 %v1646, 72
      %v1692 = vpop.permute.xlu0 %1691
      %1693 = vrot.lane.b32.xlu0 %v1653, 72
      %v1694 = vpop.permute.xlu0 %1693
      %1695 = vrot.lane.b32.xlu0 %v1660, 72
      %v1696 = vpop.permute.xlu0 %1695
      %1697 = vrot.lane.b32.xlu0 %v1667, 72
      %v1698 = vpop.permute.xlu0 %1697
      %1699 = vrot.lane.b32.xlu0 %v1674, 72
      %v1700 = vpop.permute.xlu0 %1699
      %1701 = vrot.lane.b32.xlu0 %v1681, 72
      %v1702 = vpop.permute.xlu0 %1701
      %1703 = vrot.lane.b32.xlu0 %v1688, 72
      %v1704 = vpop.permute.xlu0 %1703
      %vm1705 = vcmask 293888
      %v1707 = vsel %vm1705, %v794, %v1602
      %v1709 = vsel %vm1705, %v796, %v1604
      %v1711 = vsel %vm1705, %v798, %v1606
      %v1713 = vsel %vm1705, %v800, %v1608
      %v1715 = vsel %vm1705, %v802, %v1610
      %v1717 = vsel %vm1705, %v804, %v1612
      %v1719 = vsel %vm1705, %v806, %v1614
      %v1721 = vsel %vm1705, %v808, %v1616
      %v1723 = vsel %vm1705, %v810, %v1618
      %v1725 = vsel %vm1705, %v812, %v1620
      %v1727 = vsel %vm1705, %v814, %v1622
      %v1729 = vsel %vm1705, %v816, %v1624
      %v1731 = vsel %vm1705, %v818, %v1626
      %v1733 = vsel %vm1705, %v820, %v1628
      %v1735 = vsel %vm1705, %v822, %v1630
      %v1737 = vsel %vm1705, %v824, %v1632
      %vm1738 = vcmask 588800
      %v1740 = vsel %vm1738, %v1707, %v1690
      %v1741 = vsel %vm1738, %v1709, %v1690
      %v1743 = vsel %vm1738, %v1711, %v1692
      %v1744 = vsel %vm1738, %v1713, %v1692
      %v1746 = vsel %vm1738, %v1715, %v1694
      %v1747 = vsel %vm1738, %v1717, %v1694
      %v1749 = vsel %vm1738, %v1719, %v1696
      %v1750 = vsel %vm1738, %v1721, %v1696
      %v1752 = vsel %vm1738, %v1723, %v1698
      %v1753 = vsel %vm1738, %v1725, %v1698
      %v1755 = vsel %vm1738, %v1727, %v1700
      %v1756 = vsel %vm1738, %v1729, %v1700
      %v1758 = vsel %vm1738, %v1731, %v1702
      %v1759 = vsel %vm1738, %v1733, %v1702
      %v1761 = vsel %vm1738, %v1735, %v1704
      %v1762 = vsel %vm1738, %v1737, %v1704
      %vm1763 = vsmask.f32 6400
      %v1764 = vshrl.u32 %v1740, 16
      %v1766 = vrot.slane %v1764, 1
      %v1767 = vshll.u32 %v1740, 16
      %v1769 = vrot.slane %v1767, 2
      %v1770 = vor.u32 %v1766, %v1769
      %v1771 = vshrl.u32 %v1741, 16
      %v1773 = vrot.slane %v1771, 1
      %v1774 = vshll.u32 %v1741, 16
      %v1776 = vrot.slane %v1774, 2
      %v1777 = vor.u32 %v1773, %v1776
      %v1778 = vsel %vm1763, %v1770, %v1777
      %v1779 = vshrl.u32 %v1743, 16
      %v1781 = vrot.slane %v1779, 1
      %v1782 = vshll.u32 %v1743, 16
      %v1784 = vrot.slane %v1782, 2
      %v1785 = vor.u32 %v1781, %v1784
      %v1786 = vshrl.u32 %v1744, 16
      %v1788 = vrot.slane %v1786, 1
      %v1789 = vshll.u32 %v1744, 16
      %v1791 = vrot.slane %v1789, 2
      %v1792 = vor.u32 %v1788, %v1791
      %v1793 = vsel %vm1763, %v1785, %v1792
      %v1794 = vshrl.u32 %v1746, 16
      %v1796 = vrot.slane %v1794, 1
      %v1797 = vshll.u32 %v1746, 16
      %v1799 = vrot.slane %v1797, 2
      %v1800 = vor.u32 %v1796, %v1799
      %v1801 = vshrl.u32 %v1747, 16
      %v1803 = vrot.slane %v1801, 1
      %v1804 = vshll.u32 %v1747, 16
      %v1806 = vrot.slane %v1804, 2
      %v1807 = vor.u32 %v1803, %v1806
      %v1808 = vsel %vm1763, %v1800, %v1807
      %v1809 = vshrl.u32 %v1749, 16
      %v1811 = vrot.slane %v1809, 1
      %v1812 = vshll.u32 %v1749, 16
      %v1814 = vrot.slane %v1812, 2
      %v1815 = vor.u32 %v1811, %v1814
      %v1816 = vshrl.u32 %v1750, 16
      %v1818 = vrot.slane %v1816, 1
      %v1819 = vshll.u32 %v1750, 16
      %v1821 = vrot.slane %v1819, 2
      %v1822 = vor.u32 %v1818, %v1821
      %v1823 = vsel %vm1763, %v1815, %v1822
      %v1824 = vshrl.u32 %v1752, 16
      %v1826 = vrot.slane %v1824, 1
      %v1827 = vshll.u32 %v1752, 16
      %v1829 = vrot.slane %v1827, 2
      %v1830 = vor.u32 %v1826, %v1829
      %v1831 = vshrl.u32 %v1753, 16
      %v1833 = vrot.slane %v1831, 1
      %v1834 = vshll.u32 %v1753, 16
      %v1836 = vrot.slane %v1834, 2
      %v1837 = vor.u32 %v1833, %v1836
      %v1838 = vsel %vm1763, %v1830, %v1837
      %v1839 = vshrl.u32 %v1755, 16
      %v1841 = vrot.slane %v1839, 1
      %v1842 = vshll.u32 %v1755, 16
      %v1844 = vrot.slane %v1842, 2
      %v1845 = vor.u32 %v1841, %v1844
      %v1846 = vshrl.u32 %v1756, 16
      %v1848 = vrot.slane %v1846, 1
      %v1849 = vshll.u32 %v1756, 16
      %v1851 = vrot.slane %v1849, 2
      %v1852 = vor.u32 %v1848, %v1851
      %v1853 = vsel %vm1763, %v1845, %v1852
      %v1854 = vshrl.u32 %v1758, 16
      %v1856 = vrot.slane %v1854, 1
      %v1857 = vshll.u32 %v1758, 16
      %v1859 = vrot.slane %v1857, 2
      %v1860 = vor.u32 %v1856, %v1859
      %v1861 = vshrl.u32 %v1759, 16
      %v1863 = vrot.slane %v1861, 1
      %v1864 = vshll.u32 %v1759, 16
      %v1866 = vrot.slane %v1864, 2
      %v1867 = vor.u32 %v1863, %v1866
      %v1868 = vsel %vm1763, %v1860, %v1867
      %v1869 = vshrl.u32 %v1761, 16
      %v1871 = vrot.slane %v1869, 1
      %v1872 = vshll.u32 %v1761, 16
      %v1874 = vrot.slane %v1872, 2
      %v1875 = vor.u32 %v1871, %v1874
      %v1876 = vshrl.u32 %v1762, 16
      %v1878 = vrot.slane %v1876, 1
      %v1879 = vshll.u32 %v1762, 16
      %v1881 = vrot.slane %v1879, 2
      %v1882 = vor.u32 %v1878, %v1881
      %v1883 = vsel %vm1763, %v1875, %v1882
      %v1884 = vld [vmem:[%s1] sm:$0x3]
      %v1885 = vld [vmem:[%s2] sm:$0xf]
      %1887 = vset.pattern.permute.xlu0 0
      %1888 = vperm.xlu0 %1887, %v1885
      %v1889 = vpop.permute.xlu0 %1888
      %vm1891 = vcmask 883712
      %v1893 = vsel %vm1891, %v1884, 0
      %v1896 = vsel %vm1891, %v1778, 0
      %v1899 = vsel %vm1891, %v1793, 0
      %v1902 = vsel %vm1891, %v1808, 0
      %v1905 = vsel %vm1891, %v1823, 0
      %v1908 = vsel %vm1891, %v1838, 0
      %v1911 = vsel %vm1891, %v1853, 0
      %v1914 = vsel %vm1891, %v1868, 0
      %v1917 = vsel %vm1891, %v1883, 0
      %1919 = vmatpush.bf16.xpose.msra.mxu0 %v1917
      %1920 = vmatpush.bf16.xpose.msra.mxu0 %v1914
      %1921 = vmatpush.bf16.xpose.msra.mxu0 %v1911
      %1922 = vmatpush.bf16.xpose.msra.mxu0 %v1908
      %1923 = vmatpush.bf16.xpose.msra.mxu0 %v1905
      %1924 = vmatpush.bf16.xpose.msra.mxu0 %v1902
      %1925 = vmatpush.bf16.xpose.msra.mxu0 %v1899
      %1926 = vmatpush.bf16.xpose.msra.mxu0 %v1896
      %1927 = vmatmul.bf16.gmra.mxu0 %v1893
      %v1928 = vpop.f32.mrf.mxu0
      %v1929 = vadd.f32 %v1889, %v1928
      %v1930 = vpop.f32.mrf.mxu0
      %1931 = vdwg.mxu0
      %1932 = vst [vmem:[%s204] sm:$0xf] %v1929
      %p1933 = scmp.lt.s32.totalorder %s18, 1
      %s1934 = scalar_select %p1933, %s18, 1
      %p1935 = scmp.lt.s32.totalorder %s19, 1
      %s1936 = scalar_select %p1935, %s19, 1
      %s1937 = smul.addr %s1934, 2
      %s1938 = sadd.s32 %s1936, %s1937
      %s1939 = smul.addr %s1938, 4
      %s1940 = scalar_lea.vmem %s3, %s1939
      // Predicated region
      $region33: #{aspp_forward.1} parent=31 // pred_check
        %p1941 = pneg %p118
      $region34: #{aspp_forward.1} parent=31 // pred_check_branch
        %1943 = sbr.rel (%p1941) target = $region36
      $region35: #{aspp_forward.1} parent=31 // pred_region
        _
      $region36: #{aspp_forward.1} parent=31 // pred_fallthru
        _
    $region32: #{aspp_forward.1} parent=5 // pred_fallthru
      _
    %p1944 = scmp.le.s32.totalorder 2, %s9
    // Predicated region
    $region37: #{aspp_forward.1} parent=5 // pred_check
      %p1945 = pneg %p1944
    $region38: #{aspp_forward.1} parent=5 // pred_check_branch
      %1947 = sbr.rel (%p1945) target = $region40
    $region39: #{aspp_forward.1} parent=5 // pred_region
      %s1948 = ssub.s32 %s9, 2
      // Predicated region
      $region41: #{aspp_forward.1} parent=39 // pred_check
        %p1949 = pneg %p124
      $region42: #{aspp_forward.1} parent=39 // pred_check_branch
        %1951 = sbr.rel (%p1949) target = $region44
      $region43: #{aspp_forward.1} parent=39 // pred_region
        %p1952 = scmp.lt.s32.totalorder %s20, 1
        %s1953 = scalar_select %p1952, %s20, 1
        %p1954 = scmp.lt.s32.totalorder %s21, 1
        %s1955 = scalar_select %p1954, %s21, 1
        %s1956 = smul.addr %s1953, 2
        %s1957 = sadd.s32 %s1955, %s1956
        %s1958 = smul.addr %s1957, 4
        %s1959 = scalar_lea.vmem %s3, %s1958
      $region44: #{aspp_forward.1} parent=39 // pred_fallthru
        _
    $region40: #{aspp_forward.1} parent=5 // pred_fallthru
      _
  $region6: #{aspp_forward.1} parent=0 // loop_footer
    %s13 = sadd.s32 1, %s9
  $region7: #{aspp_forward.1} parent=0 // loop_footer_branch
    %8 = sbr.rel target = $region3
  $region8: #{aspp_forward.1} parent=0 // loop_exit
    _

</llo_original>
